<compile_context>
chip_gen: v6e
topology: v6e:2x2x1
jax: 0.10.0
libtpu: 0.0.40
codegen_flags: <defaults>
</compile_context>

<pallas_src>
import functools

import jax
import jax.numpy as jnp
from jax.experimental import pallas as pl
from jax.experimental.pallas import tpu as pltpu


def _hard_swish(x):
    return x * jnp.clip(x + 3.0, 0.0, 6.0) * (1.0 / 6.0)


def _hard_sigmoid(x):
    return jnp.clip(x + 3.0, 0.0, 6.0) * (1.0 / 6.0)


def _ds_kernel(x_ref, dww_ref, dwb_ref,
               sew1_ref, seb1_ref, sew2_ref, seb2_ref,
               pww_ref, pwb_ref,
               o_ref,
               *, ksize, stride, c, ho, wo, use_se):
    KH, KW = ksize
    hp = x_ref.shape[0]
    wp = x_ref.shape[1] // c

    x = x_ref[...].astype(jnp.float32)               # (Hp, Wp*C), lane-dense
    w_all = dww_ref[...].astype(jnp.float32)         # (KH*KW, Wo*C), BN scale folded, W-tiled

    # ---- depthwise KHxKW conv (groups == channels) in (H, W*C) layout ----
    acc = jnp.zeros((ho, wo * c), jnp.float32)
    if stride == 1:
        # kh -> sublane shift, kw -> lane shift by kw*C; tap weight broadcast over rows (VPU).
        for kh in range(KH):
            for kw in range(KW):
                patch = jax.lax.slice(x, (kh, kw * c), (kh + ho, kw * c + wo * c))
                acc = acc + patch * w_all[kh * KW + kw][None, :]
    else:
        # TODO(synk): generic strided fallback (untuned); a space-to-depth rearrangement in
        # the wrapper would be the fast path for stride > 1.
        x3 = x.reshape(hp, wp, c)
        for kh in range(KH):
            for kw in range(KW):
                patch = jax.lax.slice(
                    x3, (kh, kw, 0),
                    (kh + (ho - 1) * stride + 1, kw + (wo - 1) * stride + 1, c),
                    (stride, stride, 1))
                acc = acc + patch.reshape(ho, wo * c) * w_all[kh * KW + kw][None, :]

    # ---- folded BatchNorm bias + hard_swish (scale already folded into the weights) ----
    y = _hard_swish(acc + dwb_ref[...])              # (Ho, Wo*C)

    # ---- SE: avg pool -> fc -> relu -> fc -> hardsigmoid -> gate, all on VPU/XLU ----
    if use_se:
        s = jnp.sum(y, axis=0, keepdims=True)                                    # (1, Wo*C)
        # sew1 is pre-scaled by 1/(Ho*Wo) in the wrapper (avg-pool divide folded in).
        h = jnp.sum(s * sew1_ref[...], axis=1, keepdims=True)                    # (Cr, 1)
        h = jnp.maximum(h + seb1_ref[...], 0.0)
        g = _hard_sigmoid(jnp.sum(h * sew2_ref[...], axis=0, keepdims=True)
                          + seb2_ref[...])                                       # (1, Wo*C)
        y = y * g                                                                # tiny VPU mul

    # ---- pointwise 1x1 conv: one bf16 MXU matmul against the block-diagonal weight ----
    z = jnp.dot(y.astype(jnp.bfloat16), pww_ref[...],
                preferred_element_type=jnp.float32)                              # (Ho, Wo*C2)
    z = _hard_swish(z + pwb_ref[...])
    o_ref[...] = z.astype(o_ref.dtype)                                           # lane-dense store


@functools.partial(jax.jit, static_argnames=("stride", "padding", "dw_size", "use_se"))
def depthwise_separable(x_nchw, params, *, stride=1, padding=1, dw_size=3, use_se=True):
    x = jnp.transpose(x_nchw, (0, 2, 3, 1))          # NCHW -> NHWC
    N, H, W, C = x.shape
    KH = KW = dw_size
    Ho = (H + 2 * padding - KH) // stride + 1
    Wo = (W + 2 * padding - KW) // stride + 1
    Hp, Wp = H + 2 * padding, W + 2 * padding

    xp = jnp.pad(x, ((0, 0), (padding, padding), (padding, padding), (0, 0)))
    xp2d = xp.reshape(N, Hp, Wp * C)                 # lane-dense input: W merged into lanes

    C2 = params["pw_w"].shape[1]

    # Fold BN scales into conv weights; tile per-channel vectors along W so they are
    # already in the (.., Wo*C) lane-dense layout used by the kernel.
    dw_w = params["dw_w"] * params["dw_scale"]                       # (KH*KW, C)
    dw_wt = jnp.tile(dw_w, (1, Wo))                                  # (KH*KW, Wo*C)
    dw_bt = jnp.tile(params["dw_bias"], (1, Wo))                     # (1, Wo*C)

    if use_se:
        Cr = params["se_w1"].shape[1]
        # Fold the avg-pool 1/(Ho*Wo) into the first SE FC weight.
        se_w1t = jnp.tile(params["se_w1"].T * (1.0 / (Ho * Wo)), (1, Wo))   # (Cr, Wo*C)
        se_b1c = params["se_b1"].reshape(Cr, 1)                             # (Cr, 1)
        se_w2t = jnp.tile(params["se_w2"], (1, Wo))                         # (Cr, Wo*C)
        se_b2t = jnp.tile(params["se_b2"], (1, Wo))                         # (1, Wo*C)
    else:
        Cr = 1
        se_w1t = jnp.zeros((Cr, Wo * C), jnp.float32)
        se_b1c = jnp.zeros((Cr, 1), jnp.float32)
        se_w2t = jnp.zeros((Cr, Wo * C), jnp.float32)
        se_b2t = jnp.zeros((1, Wo * C), jnp.float32)

    # Pointwise conv: fold BN scale into the columns, then expand into a block-diagonal
    # (Wo*C, Wo*C2) bf16 weight so one matmul maps (Ho, Wo*C) -> (Ho, Wo*C2) directly.
    pw_w = params["pw_w"] * params["pw_scale"]                       # (C, C2)
    pw_blk = jnp.einsum("uv,cd->ucvd", jnp.eye(Wo, dtype=jnp.float32), pw_w)
    pw_blk = pw_blk.reshape(Wo * C, Wo * C2).astype(jnp.bfloat16)
    pw_bt = jnp.tile(params["pw_bias"], (1, Wo))                     # (1, Wo*C2)

    kernel = functools.partial(_ds_kernel, ksize=(KH, KW), stride=stride,
                               c=C, ho=Ho, wo=Wo, use_se=use_se)

    flops = int(2 * N * Ho * Wo * C * KH * KW + 2 * N * Ho * (Wo * C) * (Wo * C2))
    bytes_accessed = int(4 * (xp2d.size + dw_wt.size + dw_bt.size + se_w1t.size
                              + se_b1c.size + se_w2t.size + se_b2t.size + pw_bt.size
                              + N * Ho * Wo * C2) + 2 * pw_blk.size)

    out = pl.pallas_call(
        kernel,
        out_shape=jax.ShapeDtypeStruct((N, Ho, Wo * C2), x.dtype),
        grid_spec=pltpu.PrefetchScalarGridSpec(
            num_scalar_prefetch=0,
            grid=(N,),
            in_specs=[
                pl.BlockSpec((None, Hp, Wp * C), lambda n: (n, 0, 0)),
                pl.BlockSpec((KH * KW, Wo * C), lambda n: (0, 0)),
                pl.BlockSpec((1, Wo * C), lambda n: (0, 0)),
                pl.BlockSpec((Cr, Wo * C), lambda n: (0, 0)),
                pl.BlockSpec((Cr, 1), lambda n: (0, 0)),
                pl.BlockSpec((Cr, Wo * C), lambda n: (0, 0)),
                pl.BlockSpec((1, Wo * C), lambda n: (0, 0)),
                pl.BlockSpec((Wo * C, Wo * C2), lambda n: (0, 0)),
                pl.BlockSpec((1, Wo * C2), lambda n: (0, 0)),
            ],
            out_specs=pl.BlockSpec((None, Ho, Wo * C2), lambda n: (n, 0, 0)),
        ),
        compiler_params=pltpu.CompilerParams(
            dimension_semantics=("parallel",),
            vmem_limit_bytes=32 * 1024 * 1024),
        cost_estimate=pl.CostEstimate(flops=flops, transcendentals=0,
                                      bytes_accessed=bytes_accessed),
    )(xp2d, dw_wt, dw_bt, se_w1t, se_b1c, se_w2t, se_b2t, pw_blk, pw_bt)

    out = out.reshape(N, Ho, Wo, C2)
    return jnp.transpose(out, (0, 3, 1, 2))          # NHWC -> NCHW


def reference(x_nchw, params, *, stride=1, padding=1, dw_size=3, use_se=True):
    """Pure-JAX reference of the PyTorch forward (eval-mode BN)."""
    x = x_nchw.astype(jnp.float32)
    N, C, H, W = x.shape
    KH = KW = dw_size
    dw_w = params["dw_w"].reshape(KH, KW, C)                       # (KH, KW, C)
    w = jnp.transpose(dw_w, (2, 0, 1))[:, None, :, :]              # (C, 1, KH, KW)
    y = jax.lax.conv_general_dilated(
        x, w, (stride, stride), [(padding, padding)] * 2,
        feature_group_count=C, dimension_numbers=("NCHW", "OIHW", "NCHW"))
    y = y * params["dw_scale"][0][None, :, None, None] + params["dw_bias"][0][None, :, None, None]
    y = _hard_swish(y)
    if use_se:
        p = jnp.mean(y, axis=(2, 3))                               # (N, C)
        h = jnp.maximum(p @ params["se_w1"] + params["se_b1"], 0.0)
        g = _hard_sigmoid(h @ params["se_w2"] + params["se_b2"])
        y = y * g[:, :, None, None]
    z = jnp.einsum("nchw,cd->ndhw", y, params["pw_w"])
    z = z * params["pw_scale"][0][None, :, None, None] + params["pw_bias"][0][None, :, None, None]
    return _hard_swish(z)


def make_params(key, C1, C2, dw_size=3, reduction=4, eps=1e-5):
    """Deterministic synthetic parameters, BN folded into (scale, bias)."""
    ks = jax.random.split(key, 12)
    KH = KW = dw_size
    Cr = C1 // reduction

    def bn_fold(kg, kb, km, kv, c):
        gamma = 1.0 + 0.1 * jax.random.normal(kg, (c,), jnp.float32)
        beta = 0.1 * jax.random.normal(kb, (c,), jnp.float32)
        mean = 0.05 * jax.random.normal(km, (c,), jnp.float32)
        var = 0.5 + 0.1 * jnp.abs(jax.random.normal(kv, (c,), jnp.float32))
        scale = gamma / jnp.sqrt(var + eps)
        bias = beta - mean * scale
        return scale.reshape(1, c), bias.reshape(1, c)

    # depthwise conv weight: PyTorch (C1, 1, KH, KW) -> layout (KH*KW, C1)
    dw_w_t = 0.3 * jax.random.normal(ks[0], (C1, KH, KW), jnp.float32)
    dw_w = jnp.transpose(dw_w_t, (1, 2, 0)).reshape(KH * KW, C1)
    dw_scale, dw_bias = bn_fold(ks[1], ks[2], ks[3], ks[4], C1)

    # SE 1x1 convs: (Cr, C1, 1, 1) -> (C1, Cr); (C1, Cr, 1, 1) -> (Cr, C1)
    se_w1 = 0.3 * jax.random.normal(ks[5], (C1, Cr), jnp.float32)
    se_b1 = 0.1 * jax.random.normal(ks[6], (1, Cr), jnp.float32)
    se_w2 = 0.3 * jax.random.normal(ks[7], (Cr, C1), jnp.float32)
    se_b2 = 0.1 * jax.random.normal(ks[8], (1, C1), jnp.float32)

    # pointwise conv: PyTorch (C2, C1, 1, 1) -> (C1, C2)
    pw_w = 0.3 * jax.random.normal(ks[9], (C1, C2), jnp.float32)
    pw_scale, pw_bias = bn_fold(ks[10], ks[11], ks[0], ks[1], C2)

    return dict(dw_w=dw_w, dw_scale=dw_scale, dw_bias=dw_bias,
                se_w1=se_w1, se_b1=se_b1, se_w2=se_w2, se_b2=se_b2,
                pw_w=pw_w, pw_scale=pw_scale, pw_bias=pw_bias)


if __name__ == "__main__":
    # DepthwiseSeparable(num_channels=16, num_filters1=16, num_filters2=32,
    #                    num_groups=16, stride=1, scale=1.0, use_se=True)
    N, C1, H, W = 2, 16, 16, 16
    C2 = 32
    key = jax.random.PRNGKey(0)
    kx, kp = jax.random.split(key)
    x = jax.random.normal(kx, (N, C1, H, W), jnp.float32)   # NCHW, as in PyTorch
    params = make_params(kp, C1, C2)

    out = depthwise_separable(x, params, stride=1, padding=1, dw_size=3, use_se=True)
    out = jax.block_until_ready(out)

    ref = jax.block_until_ready(reference(x, params, stride=1, padding=1, dw_size=3, use_se=True))
    assert out.shape == (N, C2, H, W), out.shape
    # Pointwise matmul feeds the MXU in bf16 (f32 accumulation) -> slightly looser tolerance.
    assert jnp.allclose(out, ref, rtol=2e-2, atol=3e-2), float(jnp.max(jnp.abs(out - ref)))
    print("KERNEL_OK")
</pallas_src>

<mosaic_0001>
module attributes {stable_mosaic.version = 11 : i64} {
  func.func @_ds_kernel(%arg0: i32, %arg1: memref<1x18x288xf32, #tpu.memory_space<vmem>>, %arg2: memref<9x256xf32, #tpu.memory_space<vmem>>, %arg3: memref<1x256xf32, #tpu.memory_space<vmem>>, %arg4: memref<4x256xf32, #tpu.memory_space<vmem>>, %arg5: memref<4x1xf32, #tpu.memory_space<vmem>>, %arg6: memref<4x256xf32, #tpu.memory_space<vmem>>, %arg7: memref<1x256xf32, #tpu.memory_space<vmem>>, %arg8: memref<256x512xbf16, #tpu.memory_space<vmem>>, %arg9: memref<1x512xf32, #tpu.memory_space<vmem>>, %arg10: memref<1x16x512xf32, #tpu.memory_space<vmem>>) attributes {dimension_semantics = [#tpu.dimension_semantics<parallel>], iteration_bounds = array<i64: 2>, scalar_prefetch = 0 : i64, scratch_operands = 0 : i64, tpu.core_type = #tpu.core_type<tc>, window_params = [{transform_indices = @transform_0, window_bounds = array<i64: 1, 18, 288>}, {pipeline_mode = #tpu.pipeline_mode<synchronous>, transform_indices = @transform_1, window_bounds = array<i64: 9, 256>}, {pipeline_mode = #tpu.pipeline_mode<synchronous>, transform_indices = @transform_2, window_bounds = array<i64: 1, 256>}, {pipeline_mode = #tpu.pipeline_mode<synchronous>, transform_indices = @transform_3, window_bounds = array<i64: 4, 256>}, {pipeline_mode = #tpu.pipeline_mode<synchronous>, transform_indices = @transform_4, window_bounds = array<i64: 4, 1>}, {pipeline_mode = #tpu.pipeline_mode<synchronous>, transform_indices = @transform_5, window_bounds = array<i64: 4, 256>}, {pipeline_mode = #tpu.pipeline_mode<synchronous>, transform_indices = @transform_6, window_bounds = array<i64: 1, 256>}, {pipeline_mode = #tpu.pipeline_mode<synchronous>, transform_indices = @transform_7, window_bounds = array<i64: 256, 512>}, {pipeline_mode = #tpu.pipeline_mode<synchronous>, transform_indices = @transform_8, window_bounds = array<i64: 1, 512>}, {transform_indices = @transform_9, window_bounds = array<i64: 1, 16, 512>}]} {
    %c0 = arith.constant 0 : index
    %c0_0 = arith.constant 0 : index
    %c0_1 = arith.constant 0 : index
    %0 = vector.load %arg1[%c0, %c0_0, %c0_1] : memref<1x18x288xf32, #tpu.memory_space<vmem>>, vector<1x18x288xf32>
    %1 = vector.shape_cast %0 : vector<1x18x288xf32> to vector<18x288xf32>
    %c0_2 = arith.constant 0 : index
    %c0_3 = arith.constant 0 : index
    %2 = vector.load %arg2[%c0_2, %c0_3] : memref<9x256xf32, #tpu.memory_space<vmem>>, vector<9x256xf32>
    %cst = arith.constant 0.000000e+00 : f32
    %3 = vector.broadcast %cst : f32 to vector<16x256xf32>
    %4 = vector.extract_strided_slice %1 {offsets = [0, 0], sizes = [16, 256], strides = [1, 1]} : vector<18x288xf32> to vector<16x256xf32>
    %5 = vector.extract_strided_slice %2 {offsets = [0, 0], sizes = [1, 256], strides = [1, 1]} : vector<9x256xf32> to vector<1x256xf32>
    %6 = vector.shape_cast %5 : vector<1x256xf32> to vector<256xf32>
    %7 = vector.shape_cast %6 : vector<256xf32> to vector<1x256xf32>
    %8 = vector.broadcast %7 : vector<1x256xf32> to vector<16x256xf32>
    %9 = arith.mulf %4, %8 : vector<16x256xf32>
    %10 = arith.addf %3, %9 : vector<16x256xf32>
    %11 = vector.extract_strided_slice %1 {offsets = [0, 16], sizes = [16, 256], strides = [1, 1]} : vector<18x288xf32> to vector<16x256xf32>
    %12 = vector.extract_strided_slice %2 {offsets = [1, 0], sizes = [1, 256], strides = [1, 1]} : vector<9x256xf32> to vector<1x256xf32>
    %13 = vector.shape_cast %12 : vector<1x256xf32> to vector<256xf32>
    %14 = vector.shape_cast %13 : vector<256xf32> to vector<1x256xf32>
    %15 = vector.broadcast %14 : vector<1x256xf32> to vector<16x256xf32>
    %16 = arith.mulf %11, %15 : vector<16x256xf32>
    %17 = arith.addf %10, %16 : vector<16x256xf32>
    %18 = vector.extract_strided_slice %1 {offsets = [0, 32], sizes = [16, 256], strides = [1, 1]} : vector<18x288xf32> to vector<16x256xf32>
    %19 = vector.extract_strided_slice %2 {offsets = [2, 0], sizes = [1, 256], strides = [1, 1]} : vector<9x256xf32> to vector<1x256xf32>
    %20 = vector.shape_cast %19 : vector<1x256xf32> to vector<256xf32>
    %21 = vector.shape_cast %20 : vector<256xf32> to vector<1x256xf32>
    %22 = vector.broadcast %21 : vector<1x256xf32> to vector<16x256xf32>
    %23 = arith.mulf %18, %22 : vector<16x256xf32>
    %24 = arith.addf %17, %23 : vector<16x256xf32>
    %25 = vector.extract_strided_slice %1 {offsets = [1, 0], sizes = [16, 256], strides = [1, 1]} : vector<18x288xf32> to vector<16x256xf32>
    %26 = vector.extract_strided_slice %2 {offsets = [3, 0], sizes = [1, 256], strides = [1, 1]} : vector<9x256xf32> to vector<1x256xf32>
    %27 = vector.shape_cast %26 : vector<1x256xf32> to vector<256xf32>
    %28 = vector.shape_cast %27 : vector<256xf32> to vector<1x256xf32>
    %29 = vector.broadcast %28 : vector<1x256xf32> to vector<16x256xf32>
    %30 = arith.mulf %25, %29 : vector<16x256xf32>
    %31 = arith.addf %24, %30 : vector<16x256xf32>
    %32 = vector.extract_strided_slice %1 {offsets = [1, 16], sizes = [16, 256], strides = [1, 1]} : vector<18x288xf32> to vector<16x256xf32>
    %33 = vector.extract_strided_slice %2 {offsets = [4, 0], sizes = [1, 256], strides = [1, 1]} : vector<9x256xf32> to vector<1x256xf32>
    %34 = vector.shape_cast %33 : vector<1x256xf32> to vector<256xf32>
    %35 = vector.shape_cast %34 : vector<256xf32> to vector<1x256xf32>
    %36 = vector.broadcast %35 : vector<1x256xf32> to vector<16x256xf32>
    %37 = arith.mulf %32, %36 : vector<16x256xf32>
    %38 = arith.addf %31, %37 : vector<16x256xf32>
    %39 = vector.extract_strided_slice %1 {offsets = [1, 32], sizes = [16, 256], strides = [1, 1]} : vector<18x288xf32> to vector<16x256xf32>
    %40 = vector.extract_strided_slice %2 {offsets = [5, 0], sizes = [1, 256], strides = [1, 1]} : vector<9x256xf32> to vector<1x256xf32>
    %41 = vector.shape_cast %40 : vector<1x256xf32> to vector<256xf32>
    %42 = vector.shape_cast %41 : vector<256xf32> to vector<1x256xf32>
    %43 = vector.broadcast %42 : vector<1x256xf32> to vector<16x256xf32>
    %44 = arith.mulf %39, %43 : vector<16x256xf32>
    %45 = arith.addf %38, %44 : vector<16x256xf32>
    %46 = vector.extract_strided_slice %1 {offsets = [2, 0], sizes = [16, 256], strides = [1, 1]} : vector<18x288xf32> to vector<16x256xf32>
    %47 = vector.extract_strided_slice %2 {offsets = [6, 0], sizes = [1, 256], strides = [1, 1]} : vector<9x256xf32> to vector<1x256xf32>
    %48 = vector.shape_cast %47 : vector<1x256xf32> to vector<256xf32>
    %49 = vector.shape_cast %48 : vector<256xf32> to vector<1x256xf32>
    %50 = vector.broadcast %49 : vector<1x256xf32> to vector<16x256xf32>
    %51 = arith.mulf %46, %50 : vector<16x256xf32>
    %52 = arith.addf %45, %51 : vector<16x256xf32>
    %53 = vector.extract_strided_slice %1 {offsets = [2, 16], sizes = [16, 256], strides = [1, 1]} : vector<18x288xf32> to vector<16x256xf32>
    %54 = vector.extract_strided_slice %2 {offsets = [7, 0], sizes = [1, 256], strides = [1, 1]} : vector<9x256xf32> to vector<1x256xf32>
    %55 = vector.shape_cast %54 : vector<1x256xf32> to vector<256xf32>
    %56 = vector.shape_cast %55 : vector<256xf32> to vector<1x256xf32>
    %57 = vector.broadcast %56 : vector<1x256xf32> to vector<16x256xf32>
    %58 = arith.mulf %53, %57 : vector<16x256xf32>
    %59 = arith.addf %52, %58 : vector<16x256xf32>
    %60 = vector.extract_strided_slice %1 {offsets = [2, 32], sizes = [16, 256], strides = [1, 1]} : vector<18x288xf32> to vector<16x256xf32>
    %61 = vector.extract_strided_slice %2 {offsets = [8, 0], sizes = [1, 256], strides = [1, 1]} : vector<9x256xf32> to vector<1x256xf32>
    %62 = vector.shape_cast %61 : vector<1x256xf32> to vector<256xf32>
    %63 = vector.shape_cast %62 : vector<256xf32> to vector<1x256xf32>
    %64 = vector.broadcast %63 : vector<1x256xf32> to vector<16x256xf32>
    %65 = arith.mulf %60, %64 : vector<16x256xf32>
    %66 = arith.addf %59, %65 : vector<16x256xf32>
    %c0_4 = arith.constant 0 : index
    %c0_5 = arith.constant 0 : index
    %67 = vector.load %arg3[%c0_4, %c0_5] : memref<1x256xf32, #tpu.memory_space<vmem>>, vector<1x256xf32>
    %68 = vector.broadcast %67 : vector<1x256xf32> to vector<16x256xf32>
    %69 = arith.addf %66, %68 : vector<16x256xf32>
    %cst_6 = arith.constant 3.000000e+00 : f32
    %70 = vector.broadcast %cst_6 : f32 to vector<16x256xf32>
    %71 = arith.addf %69, %70 : vector<16x256xf32>
    %cst_7 = arith.constant 0.000000e+00 : f32
    %cst_8 = arith.constant 6.000000e+00 : f32
    %72 = vector.broadcast %cst_7 : f32 to vector<16x256xf32>
    %73 = arith.maximumf %72, %71 : vector<16x256xf32>
    %74 = vector.broadcast %cst_8 : f32 to vector<16x256xf32>
    %75 = arith.minimumf %74, %73 : vector<16x256xf32>
    %76 = arith.mulf %69, %75 : vector<16x256xf32>
    %cst_9 = arith.constant 0.166666672 : f32
    %77 = vector.broadcast %cst_9 : f32 to vector<16x256xf32>
    %78 = arith.mulf %76, %77 : vector<16x256xf32>
    %cst_10 = arith.constant dense<0.000000e+00> : vector<256xf32>
    %79 = vector.multi_reduction <add>, %78, %cst_10 [0] : vector<16x256xf32> to vector<256xf32>
    %80 = vector.shape_cast %79 : vector<256xf32> to vector<1x256xf32>
    %c0_11 = arith.constant 0 : index
    %c0_12 = arith.constant 0 : index
    %81 = vector.load %arg4[%c0_11, %c0_12] : memref<4x256xf32, #tpu.memory_space<vmem>>, vector<4x256xf32>
    %82 = vector.broadcast %80 : vector<1x256xf32> to vector<4x256xf32>
    %83 = arith.mulf %82, %81 : vector<4x256xf32>
    %cst_13 = arith.constant dense<0.000000e+00> : vector<4xf32>
    %84 = vector.multi_reduction <add>, %83, %cst_13 [1] : vector<4x256xf32> to vector<4xf32>
    %85 = vector.shape_cast %84 : vector<4xf32> to vector<4x1xf32>
    %c0_14 = arith.constant 0 : index
    %c0_15 = arith.constant 0 : index
    %86 = vector.load %arg5[%c0_14, %c0_15] : memref<4x1xf32, #tpu.memory_space<vmem>>, vector<4x1xf32>
    %87 = arith.addf %85, %86 : vector<4x1xf32>
    %cst_16 = arith.constant 0.000000e+00 : f32
    %88 = vector.broadcast %cst_16 : f32 to vector<4x1xf32>
    %89 = arith.maximumf %87, %88 : vector<4x1xf32>
    %c0_17 = arith.constant 0 : index
    %c0_18 = arith.constant 0 : index
    %90 = vector.load %arg6[%c0_17, %c0_18] : memref<4x256xf32, #tpu.memory_space<vmem>>, vector<4x256xf32>
    %91 = vector.broadcast %89 : vector<4x1xf32> to vector<4x256xf32>
    %92 = arith.mulf %91, %90 : vector<4x256xf32>
    %cst_19 = arith.constant dense<0.000000e+00> : vector<256xf32>
    %93 = vector.multi_reduction <add>, %92, %cst_19 [0] : vector<4x256xf32> to vector<256xf32>
    %94 = vector.shape_cast %93 : vector<256xf32> to vector<1x256xf32>
    %c0_20 = arith.constant 0 : index
    %c0_21 = arith.constant 0 : index
    %95 = vector.load %arg7[%c0_20, %c0_21] : memref<1x256xf32, #tpu.memory_space<vmem>>, vector<1x256xf32>
    %96 = arith.addf %94, %95 : vector<1x256xf32>
    %cst_22 = arith.constant 3.000000e+00 : f32
    %97 = vector.broadcast %cst_22 : f32 to vector<1x256xf32>
    %98 = arith.addf %96, %97 : vector<1x256xf32>
    %cst_23 = arith.constant 0.000000e+00 : f32
    %cst_24 = arith.constant 6.000000e+00 : f32
    %99 = vector.broadcast %cst_23 : f32 to vector<1x256xf32>
    %100 = arith.maximumf %99, %98 : vector<1x256xf32>
    %101 = vector.broadcast %cst_24 : f32 to vector<1x256xf32>
    %102 = arith.minimumf %101, %100 : vector<1x256xf32>
    %cst_25 = arith.constant 0.166666672 : f32
    %103 = vector.broadcast %cst_25 : f32 to vector<1x256xf32>
    %104 = arith.mulf %102, %103 : vector<1x256xf32>
    %105 = vector.broadcast %104 : vector<1x256xf32> to vector<16x256xf32>
    %106 = arith.mulf %78, %105 : vector<16x256xf32>
    %107 = arith.truncf %106 : vector<16x256xf32> to vector<16x256xbf16>
    %c0_26 = arith.constant 0 : index
    %c0_27 = arith.constant 0 : index
    %108 = vector.load %arg8[%c0_26, %c0_27] : memref<256x512xbf16, #tpu.memory_space<vmem>>, vector<256x512xbf16>
    %cst_28 = arith.constant dense<0.000000e+00> : vector<16x512xf32>
    %109 = tpu.matmul %107, %108, %cst_28 {dimension_numbers = #tpu.dot_dimension_numbers<[1], [0], [0], [1], [0, 0, 1, 1], [], []>} : vector<16x256xbf16>, vector<256x512xbf16>, vector<16x512xf32> -> vector<16x512xf32>
    %c0_29 = arith.constant 0 : index
    %c0_30 = arith.constant 0 : index
    %110 = vector.load %arg9[%c0_29, %c0_30] : memref<1x512xf32, #tpu.memory_space<vmem>>, vector<1x512xf32>
    %111 = vector.broadcast %110 : vector<1x512xf32> to vector<16x512xf32>
    %112 = arith.addf %109, %111 : vector<16x512xf32>
    %cst_31 = arith.constant 3.000000e+00 : f32
    %113 = vector.broadcast %cst_31 : f32 to vector<16x512xf32>
    %114 = arith.addf %112, %113 : vector<16x512xf32>
    %cst_32 = arith.constant 0.000000e+00 : f32
    %cst_33 = arith.constant 6.000000e+00 : f32
    %115 = vector.broadcast %cst_32 : f32 to vector<16x512xf32>
    %116 = arith.maximumf %115, %114 : vector<16x512xf32>
    %117 = vector.broadcast %cst_33 : f32 to vector<16x512xf32>
    %118 = arith.minimumf %117, %116 : vector<16x512xf32>
    %119 = arith.mulf %112, %118 : vector<16x512xf32>
    %cst_34 = arith.constant 0.166666672 : f32
    %120 = vector.broadcast %cst_34 : f32 to vector<16x512xf32>
    %121 = arith.mulf %119, %120 : vector<16x512xf32>
    %c0_35 = arith.constant 0 : index
    %c0_36 = arith.constant 0 : index
    %c0_37 = arith.constant 0 : index
    %122 = vector.load %arg10[%c0_35, %c0_36, %c0_37] : memref<1x16x512xf32, #tpu.memory_space<vmem>>, vector<1x16x512xf32>
    %123 = vector.shape_cast %122 : vector<1x16x512xf32> to vector<16x512xf32>
    %124 = vector.shape_cast %121 : vector<16x512xf32> to vector<1x16x512xf32>
    tpu.vector_store %arg10[%c0_35, %c0_36, %c0_37], %124 {strides = array<i32>} : memref<1x16x512xf32, #tpu.memory_space<vmem>>, vector<1x16x512xf32>,
    return
  }
  func.func @transform_0(%arg0: i32) -> (i32, i32, i32) {
    %c0_i32 = arith.constant 0 : i32
    %c0_i32_0 = arith.constant 0 : i32
    %c0_i32_1 = arith.constant 0 : i32
    return %arg0, %c0_i32, %c0_i32_0 : i32, i32, i32
  }
  func.func @transform_1(%arg0: i32) -> (i32, i32) {
    %c0_i32 = arith.constant 0 : i32
    %c0_i32_0 = arith.constant 0 : i32
    %c0_i32_1 = arith.constant 0 : i32
    return %c0_i32, %c0_i32_0 : i32, i32
  }
  func.func @transform_2(%arg0: i32) -> (i32, i32) {
    %c0_i32 = arith.constant 0 : i32
    %c0_i32_0 = arith.constant 0 : i32
    %c0_i32_1 = arith.constant 0 : i32
    return %c0_i32, %c0_i32_0 : i32, i32
  }
  func.func @transform_3(%arg0: i32) -> (i32, i32) {
    %c0_i32 = arith.constant 0 : i32
    %c0_i32_0 = arith.constant 0 : i32
    %c0_i32_1 = arith.constant 0 : i32
    return %c0_i32, %c0_i32_0 : i32, i32
  }
  func.func @transform_4(%arg0: i32) -> (i32, i32) {
    %c0_i32 = arith.constant 0 : i32
    %c0_i32_0 = arith.constant 0 : i32
    %c0_i32_1 = arith.constant 0 : i32
    return %c0_i32, %c0_i32_0 : i32, i32
  }
  func.func @transform_5(%arg0: i32) -> (i32, i32) {
    %c0_i32 = arith.constant 0 : i32
    %c0_i32_0 = arith.constant 0 : i32
    %c0_i32_1 = arith.constant 0 : i32
    return %c0_i32, %c0_i32_0 : i32, i32
  }
  func.func @transform_6(%arg0: i32) -> (i32, i32) {
    %c0_i32 = arith.constant 0 : i32
    %c0_i32_0 = arith.constant 0 : i32
    %c0_i32_1 = arith.constant 0 : i32
    return %c0_i32, %c0_i32_0 : i32, i32
  }
  func.func @transform_7(%arg0: i32) -> (i32, i32) {
    %c0_i32 = arith.constant 0 : i32
    %c0_i32_0 = arith.constant 0 : i32
    %c0_i32_1 = arith.constant 0 : i32
    return %c0_i32, %c0_i32_0 : i32, i32
  }
  func.func @transform_8(%arg0: i32) -> (i32, i32) {
    %c0_i32 = arith.constant 0 : i32
    %c0_i32_0 = arith.constant 0 : i32
    %c0_i32_1 = arith.constant 0 : i32
    return %c0_i32, %c0_i32_0 : i32, i32
  }
  func.func @transform_9(%arg0: i32) -> (i32, i32, i32) {
    %c0_i32 = arith.constant 0 : i32
    %c0_i32_0 = arith.constant 0 : i32
    %c0_i32_1 = arith.constant 0 : i32
    return %arg0, %c0_i32, %c0_i32_0 : i32, i32, i32
  }
}

</mosaic_0001>

<llo_original>
// kernel: tile.34
$region0: #{tile.34}
  %s0 = inlined_call_operand.vmem [shape: f32[9,16,16], index: 0, kind: input, shape index: {}]
  %s1 = inlined_call_operand.vmem [shape: f32[9,256], index: 1, kind: output, shape index: {}]
  %v2 = vld [vmem:[%s0] ss:$8 sm:$0xf]
  %v3 = vld [vmem:[%s0] ss:$8 sm:$0xf0]
  %vm4 = vcmask 1047556
  %v5 = vsel %vm4, %v3, %v2
  %vm6 = vcmask 130048
  %7 = vst.msk [vmem:[%s1] ss:$8 sm:$0x3] %vm6, %v5
  %s8 = scalar_lea.vmem %s1, 4294967281
  %9 = vst.msk [vmem:[%s8] ss:$8 sm:$0xc] %vm6, %v5
  %s10 = scalar_lea.vmem %s1, 4294967266
  %11 = vst.msk [vmem:[%s10] ss:$8 sm:$0x30] %vm6, %v5
  %s12 = scalar_lea.vmem %s1, 4294967251
  %13 = vst.msk [vmem:[%s12] ss:$8 sm:$0xc0] %vm6, %v5
  %s14 = scalar_lea.vmem %s0, 64
  %v15 = vld [vmem:[%s14] ss:$8 sm:$0xf]
  %s16 = scalar_lea.vmem %s0, 64
  %v17 = vld [vmem:[%s16] ss:$8 sm:$0xf0]
  %vm18 = vcmask 1047556
  %v19 = vsel %vm18, %v17, %v15
  %vm20 = vcmask 130048
  %s21 = scalar_lea.vmem %s1, 4
  %22 = vst.msk [vmem:[%s21] ss:$8 sm:$0x3] %vm20, %v19
  %s23 = scalar_lea.vmem %s1, 4294967285
  %24 = vst.msk [vmem:[%s23] ss:$8 sm:$0xc] %vm20, %v19
  %s25 = scalar_lea.vmem %s1, 4294967270
  %26 = vst.msk [vmem:[%s25] ss:$8 sm:$0x30] %vm20, %v19
  %s27 = scalar_lea.vmem %s1, 4294967255
  %28 = vst.msk [vmem:[%s27] ss:$8 sm:$0xc0] %vm20, %v19
  %s29 = scalar_lea.vmem %s0, 128
  %s30 = smov 3
  %v31 = vld [vmem:[%s29] ss:$8 sm:%s30]
  %vm32 = vcmask 130048
  %s33 = scalar_lea.vmem %s1, 16
  %34 = vst.msk [vmem:[%s33] ss:$8 sm:$0x3] %vm32, %v31
  %s35 = scalar_lea.vmem %s0, 7
  %s36 = smov 3
  %v37 = vld [vmem:[%s35] ss:$16 sm:%s36]
  %s38 = scalar_lea.vmem %s0, 7
  %s39 = smov 12
  %v40 = vld [vmem:[%s38] ss:$16 sm:%s39]
  %vm41 = vcmask 1043458
  %v42 = vsel %vm41, %v40, %v37
  %s43 = scalar_lea.vmem %s0, 7
  %s44 = smov 48
  %v45 = vld [vmem:[%s43] ss:$16 sm:%s44]
  %vm46 = vcmask 1045508
  %v47 = vsel %vm46, %v45, %v42
  %s48 = scalar_lea.vmem %s0, 7
  %s49 = smov 192
  %v50 = vld [vmem:[%s48] ss:$16 sm:%s49]
  %vm51 = vcmask 1047558
  %v52 = vsel %vm51, %v50, %v47
  %53 = vrot.lane.b32.xlu0 %v52, 112
  %v54 = vpop.permute.xlu0 %53
  %vm55 = vcmask 1048448
  %56 = vst.msk [vmem:[%s1] sm:$0xff] %vm55, %v54
  %s57 = scalar_lea.vmem %s0, 15
  %s58 = smov 3
  %v59 = vld [vmem:[%s57] ss:$16 sm:%s58]
  %s60 = scalar_lea.vmem %s0, 15
  %s61 = smov 12
  %v62 = vld [vmem:[%s60] ss:$16 sm:%s61]
  %vm63 = vcmask 1043458
  %v64 = vsel %vm63, %v62, %v59
  %s65 = scalar_lea.vmem %s0, 15
  %s66 = smov 48
  %v67 = vld [vmem:[%s65] ss:$16 sm:%s66]
  %vm68 = vcmask 1045508
  %v69 = vsel %vm68, %v67, %v64
  %s70 = scalar_lea.vmem %s0, 15
  %s71 = smov 192
  %v72 = vld [vmem:[%s70] ss:$16 sm:%s71]
  %vm73 = vcmask 1047558
  %v74 = vsel %vm73, %v72, %v69
  %75 = vrot.lane.b32.xlu0 %v74, 112
  %v76 = vpop.permute.xlu0 %75
  %vm77 = vcmask 1048448
  %s78 = scalar_lea.vmem %s1, 8
  %79 = vst.msk [vmem:[%s78] sm:$0xff] %vm77, %v76
  %s80 = scalar_lea.vmem %s0, 135
  %s81 = smov 3
  %v82 = vld [vmem:[%s80] ss:$8 sm:%s81]
  %83 = vrot.lane.b32.xlu0 %v82, 112
  %v84 = vpop.permute.xlu0 %83
  %vm85 = vcmask 1048448
  %s86 = scalar_lea.vmem %s1, 16
  %87 = vst.msk [vmem:[%s86] ss:$8 sm:$0x3] %vm85, %v84
  %s88 = scalar_lea.vmem %s0, 6
  %s89 = smov 3
  %v90 = vld [vmem:[%s88] ss:$16 sm:%s89]
  %s91 = scalar_lea.vmem %s0, 6
  %s92 = smov 12
  %v93 = vld [vmem:[%s91] ss:$16 sm:%s92]
  %vm94 = vcmask 1043458
  %v95 = vsel %vm94, %v93, %v90
  %s96 = scalar_lea.vmem %s0, 6
  %s97 = smov 48
  %v98 = vld [vmem:[%s96] ss:$16 sm:%s97]
  %vm99 = vcmask 1045508
  %v100 = vsel %vm99, %v98, %v95
  %s101 = scalar_lea.vmem %s0, 6
  %s102 = smov 192
  %v103 = vld [vmem:[%s101] ss:$16 sm:%s102]
  %vm104 = vcmask 1047558
  %v105 = vsel %vm104, %v103, %v100
  %106 = vrot.lane.b32.xlu0 %v105, 96
  %v107 = vpop.permute.xlu0 %106
  %vm108 = vcmask 917248
  %109 = vst.msk [vmem:[%s1] sm:$0xff] %vm108, %v107
  %s110 = scalar_lea.vmem %s0, 14
  %s111 = smov 3
  %v112 = vld [vmem:[%s110] ss:$16 sm:%s111]
  %s113 = scalar_lea.vmem %s0, 14
  %s114 = smov 12
  %v115 = vld [vmem:[%s113] ss:$16 sm:%s114]
  %vm116 = vcmask 1043458
  %v117 = vsel %vm116, %v115, %v112
  %s118 = scalar_lea.vmem %s0, 14
  %s119 = smov 48
  %v120 = vld [vmem:[%s118] ss:$16 sm:%s119]
  %vm121 = vcmask 1045508
  %v122 = vsel %vm121, %v120, %v117
  %s123 = scalar_lea.vmem %s0, 14
  %s124 = smov 192
  %v125 = vld [vmem:[%s123] ss:$16 sm:%s124]
  %vm126 = vcmask 1047558
  %v127 = vsel %vm126, %v125, %v122
  %128 = vrot.lane.b32.xlu0 %v127, 96
  %v129 = vpop.permute.xlu0 %128
  %vm130 = vcmask 917248
  %s131 = scalar_lea.vmem %s1, 8
  %132 = vst.msk [vmem:[%s131] sm:$0xff] %vm130, %v129
  %s133 = scalar_lea.vmem %s0, 134
  %s134 = smov 3
  %v135 = vld [vmem:[%s133] ss:$8 sm:%s134]
  %136 = vrot.lane.b32.xlu0 %v135, 96
  %v137 = vpop.permute.xlu0 %136
  %vm138 = vcmask 917248
  %s139 = scalar_lea.vmem %s1, 16
  %140 = vst.msk [vmem:[%s139] ss:$8 sm:$0x3] %vm138, %v137
  %s141 = scalar_lea.vmem %s0, 5
  %s142 = smov 3
  %v143 = vld [vmem:[%s141] ss:$16 sm:%s142]
  %s144 = scalar_lea.vmem %s0, 5
  %s145 = smov 12
  %v146 = vld [vmem:[%s144] ss:$16 sm:%s145]
  %vm147 = vcmask 1043458
  %v148 = vsel %vm147, %v146, %v143
  %s149 = scalar_lea.vmem %s0, 5
  %s150 = smov 48
  %v151 = vld [vmem:[%s149] ss:$16 sm:%s150]
  %vm152 = vcmask 1045508
  %v153 = vsel %vm152, %v151, %v148
  %s154 = scalar_lea.vmem %s0, 5
  %s155 = smov 192
  %v156 = vld [vmem:[%s154] ss:$16 sm:%s155]
  %vm157 = vcmask 1047558
  %v158 = vsel %vm157, %v156, %v153
  %159 = vrot.lane.b32.xlu0 %v158, 80
  %v160 = vpop.permute.xlu0 %159
  %vm161 = vcmask 786048
  %162 = vst.msk [vmem:[%s1] sm:$0xff] %vm161, %v160
  %s163 = scalar_lea.vmem %s0, 13
  %s164 = smov 3
  %v165 = vld [vmem:[%s163] ss:$16 sm:%s164]
  %s166 = scalar_lea.vmem %s0, 13
  %s167 = smov 12
  %v168 = vld [vmem:[%s166] ss:$16 sm:%s167]
  %vm169 = vcmask 1043458
  %v170 = vsel %vm169, %v168, %v165
  %s171 = scalar_lea.vmem %s0, 13
  %s172 = smov 48
  %v173 = vld [vmem:[%s171] ss:$16 sm:%s172]
  %vm174 = vcmask 1045508
  %v175 = vsel %vm174, %v173, %v170
  %s176 = scalar_lea.vmem %s0, 13
  %s177 = smov 192
  %v178 = vld [vmem:[%s176] ss:$16 sm:%s177]
  %vm179 = vcmask 1047558
  %v180 = vsel %vm179, %v178, %v175
  %181 = vrot.lane.b32.xlu0 %v180, 80
  %v182 = vpop.permute.xlu0 %181
  %vm183 = vcmask 786048
  %s184 = scalar_lea.vmem %s1, 8
  %185 = vst.msk [vmem:[%s184] sm:$0xff] %vm183, %v182
  %s186 = scalar_lea.vmem %s0, 133
  %s187 = smov 3
  %v188 = vld [vmem:[%s186] ss:$8 sm:%s187]
  %189 = vrot.lane.b32.xlu0 %v188, 80
  %v190 = vpop.permute.xlu0 %189
  %vm191 = vcmask 786048
  %s192 = scalar_lea.vmem %s1, 16
  %193 = vst.msk [vmem:[%s192] ss:$8 sm:$0x3] %vm191, %v190
  %s194 = scalar_lea.vmem %s0, 4
  %s195 = smov 3
  %v196 = vld [vmem:[%s194] ss:$16 sm:%s195]
  %s197 = scalar_lea.vmem %s0, 4
  %s198 = smov 12
  %v199 = vld [vmem:[%s197] ss:$16 sm:%s198]
  %vm200 = vcmask 1043458
  %v201 = vsel %vm200, %v199, %v196
  %s202 = scalar_lea.vmem %s0, 4
  %s203 = smov 48
  %v204 = vld [vmem:[%s202] ss:$16 sm:%s203]
  %vm205 = vcmask 1045508
  %v206 = vsel %vm205, %v204, %v201
  %s207 = scalar_lea.vmem %s0, 4
  %s208 = smov 192
  %v209 = vld [vmem:[%s207] ss:$16 sm:%s208]
  %vm210 = vcmask 1047558
  %v211 = vsel %vm210, %v209, %v206
  %212 = vrot.lane.b32.xlu0 %v211, 64
  %v213 = vpop.permute.xlu0 %212
  %vm214 = vcmask 654848
  %215 = vst.msk [vmem:[%s1] sm:$0xff] %vm214, %v213
  %s216 = scalar_lea.vmem %s0, 12
  %s217 = smov 3
  %v218 = vld [vmem:[%s216] ss:$16 sm:%s217]
  %s219 = scalar_lea.vmem %s0, 12
  %s220 = smov 12
  %v221 = vld [vmem:[%s219] ss:$16 sm:%s220]
  %vm222 = vcmask 1043458
  %v223 = vsel %vm222, %v221, %v218
  %s224 = scalar_lea.vmem %s0, 12
  %s225 = smov 48
  %v226 = vld [vmem:[%s224] ss:$16 sm:%s225]
  %vm227 = vcmask 1045508
  %v228 = vsel %vm227, %v226, %v223
  %s229 = scalar_lea.vmem %s0, 12
  %s230 = smov 192
  %v231 = vld [vmem:[%s229] ss:$16 sm:%s230]
  %vm232 = vcmask 1047558
  %v233 = vsel %vm232, %v231, %v228
  %234 = vrot.lane.b32.xlu0 %v233, 64
  %v235 = vpop.permute.xlu0 %234
  %vm236 = vcmask 654848
  %s237 = scalar_lea.vmem %s1, 8
  %238 = vst.msk [vmem:[%s237] sm:$0xff] %vm236, %v235
  %s239 = scalar_lea.vmem %s0, 132
  %s240 = smov 3
  %v241 = vld [vmem:[%s239] ss:$8 sm:%s240]
  %242 = vrot.lane.b32.xlu0 %v241, 64
  %v243 = vpop.permute.xlu0 %242
  %vm244 = vcmask 654848
  %s245 = scalar_lea.vmem %s1, 16
  %246 = vst.msk [vmem:[%s245] ss:$8 sm:$0x3] %vm244, %v243
  %s247 = scalar_lea.vmem %s0, 3
  %s248 = smov 3
  %v249 = vld [vmem:[%s247] ss:$16 sm:%s248]
  %s250 = scalar_lea.vmem %s0, 3
  %s251 = smov 12
  %v252 = vld [vmem:[%s250] ss:$16 sm:%s251]
  %vm253 = vcmask 1043458
  %v254 = vsel %vm253, %v252, %v249
  %s255 = scalar_lea.vmem %s0, 3
  %s256 = smov 48
  %v257 = vld [vmem:[%s255] ss:$16 sm:%s256]
  %vm258 = vcmask 1045508
  %v259 = vsel %vm258, %v257, %v254
  %s260 = scalar_lea.vmem %s0, 3
  %s261 = smov 192
  %v262 = vld [vmem:[%s260] ss:$16 sm:%s261]
  %vm263 = vcmask 1047558
  %v264 = vsel %vm263, %v262, %v259
  %265 = vrot.lane.b32.xlu0 %v264, 48
  %v266 = vpop.permute.xlu0 %265
  %vm267 = vcmask 523648
  %268 = vst.msk [vmem:[%s1] sm:$0xff] %vm267, %v266
  %s269 = scalar_lea.vmem %s0, 11
  %s270 = smov 3
  %v271 = vld [vmem:[%s269] ss:$16 sm:%s270]
  %s272 = scalar_lea.vmem %s0, 11
  %s273 = smov 12
  %v274 = vld [vmem:[%s272] ss:$16 sm:%s273]
  %vm275 = vcmask 1043458
  %v276 = vsel %vm275, %v274, %v271
  %s277 = scalar_lea.vmem %s0, 11
  %s278 = smov 48
  %v279 = vld [vmem:[%s277] ss:$16 sm:%s278]
  %vm280 = vcmask 1045508
  %v281 = vsel %vm280, %v279, %v276
  %s282 = scalar_lea.vmem %s0, 11
  %s283 = smov 192
  %v284 = vld [vmem:[%s282] ss:$16 sm:%s283]
  %vm285 = vcmask 1047558
  %v286 = vsel %vm285, %v284, %v281
  %287 = vrot.lane.b32.xlu0 %v286, 48
  %v288 = vpop.permute.xlu0 %287
  %vm289 = vcmask 523648
  %s290 = scalar_lea.vmem %s1, 8
  %291 = vst.msk [vmem:[%s290] sm:$0xff] %vm289, %v288
  %s292 = scalar_lea.vmem %s0, 131
  %s293 = smov 3
  %v294 = vld [vmem:[%s292] ss:$8 sm:%s293]
  %295 = vrot.lane.b32.xlu0 %v294, 48
  %v296 = vpop.permute.xlu0 %295
  %vm297 = vcmask 523648
  %s298 = scalar_lea.vmem %s1, 16
  %299 = vst.msk [vmem:[%s298] ss:$8 sm:$0x3] %vm297, %v296
  %s300 = scalar_lea.vmem %s0, 2
  %s301 = smov 3
  %v302 = vld [vmem:[%s300] ss:$16 sm:%s301]
  %s303 = scalar_lea.vmem %s0, 2
  %s304 = smov 12
  %v305 = vld [vmem:[%s303] ss:$16 sm:%s304]
  %vm306 = vcmask 1043458
  %v307 = vsel %vm306, %v305, %v302
  %s308 = scalar_lea.vmem %s0, 2
  %s309 = smov 48
  %v310 = vld [vmem:[%s308] ss:$16 sm:%s309]
  %vm311 = vcmask 1045508
  %v312 = vsel %vm311, %v310, %v307
  %s313 = scalar_lea.vmem %s0, 2
  %s314 = smov 192
  %v315 = vld [vmem:[%s313] ss:$16 sm:%s314]
  %vm316 = vcmask 1047558
  %v317 = vsel %vm316, %v315, %v312
  %318 = vrot.lane.b32.xlu0 %v317, 32
  %v319 = vpop.permute.xlu0 %318
  %vm320 = vcmask 392448
  %321 = vst.msk [vmem:[%s1] sm:$0xff] %vm320, %v319
  %s322 = scalar_lea.vmem %s0, 10
  %s323 = smov 3
  %v324 = vld [vmem:[%s322] ss:$16 sm:%s323]
  %s325 = scalar_lea.vmem %s0, 10
  %s326 = smov 12
  %v327 = vld [vmem:[%s325] ss:$16 sm:%s326]
  %vm328 = vcmask 1043458
  %v329 = vsel %vm328, %v327, %v324
  %s330 = scalar_lea.vmem %s0, 10
  %s331 = smov 48
  %v332 = vld [vmem:[%s330] ss:$16 sm:%s331]
  %vm333 = vcmask 1045508
  %v334 = vsel %vm333, %v332, %v329
  %s335 = scalar_lea.vmem %s0, 10
  %s336 = smov 192
  %v337 = vld [vmem:[%s335] ss:$16 sm:%s336]
  %vm338 = vcmask 1047558
  %v339 = vsel %vm338, %v337, %v334
  %340 = vrot.lane.b32.xlu0 %v339, 32
  %v341 = vpop.permute.xlu0 %340
  %vm342 = vcmask 392448
  %s343 = scalar_lea.vmem %s1, 8
  %344 = vst.msk [vmem:[%s343] sm:$0xff] %vm342, %v341
  %s345 = scalar_lea.vmem %s0, 130
  %s346 = smov 3
  %v347 = vld [vmem:[%s345] ss:$8 sm:%s346]
  %348 = vrot.lane.b32.xlu0 %v347, 32
  %v349 = vpop.permute.xlu0 %348
  %vm350 = vcmask 392448
  %s351 = scalar_lea.vmem %s1, 16
  %352 = vst.msk [vmem:[%s351] ss:$8 sm:$0x3] %vm350, %v349
  %s353 = scalar_lea.vmem %s0, 1
  %s354 = smov 3
  %v355 = vld [vmem:[%s353] ss:$16 sm:%s354]
  %s356 = scalar_lea.vmem %s0, 1
  %s357 = smov 12
  %v358 = vld [vmem:[%s356] ss:$16 sm:%s357]
  %vm359 = vcmask 1043458
  %v360 = vsel %vm359, %v358, %v355
  %s361 = scalar_lea.vmem %s0, 1
  %s362 = smov 48
  %v363 = vld [vmem:[%s361] ss:$16 sm:%s362]
  %vm364 = vcmask 1045508
  %v365 = vsel %vm364, %v363, %v360
  %s366 = scalar_lea.vmem %s0, 1
  %s367 = smov 192
  %v368 = vld [vmem:[%s366] ss:$16 sm:%s367]
  %vm369 = vcmask 1047558
  %v370 = vsel %vm369, %v368, %v365
  %371 = vrot.lane.b32.xlu0 %v370, 16
  %v372 = vpop.permute.xlu0 %371
  %vm373 = vcmask 261248
  %374 = vst.msk [vmem:[%s1] sm:$0xff] %vm373, %v372
  %s375 = scalar_lea.vmem %s0, 9
  %s376 = smov 3
  %v377 = vld [vmem:[%s375] ss:$16 sm:%s376]
  %s378 = scalar_lea.vmem %s0, 9
  %s379 = smov 12
  %v380 = vld [vmem:[%s378] ss:$16 sm:%s379]
  %vm381 = vcmask 1043458
  %v382 = vsel %vm381, %v380, %v377
  %s383 = scalar_lea.vmem %s0, 9
  %s384 = smov 48
  %v385 = vld [vmem:[%s383] ss:$16 sm:%s384]
  %vm386 = vcmask 1045508
  %v387 = vsel %vm386, %v385, %v382
  %s388 = scalar_lea.vmem %s0, 9
  %s389 = smov 192
  %v390 = vld [vmem:[%s388] ss:$16 sm:%s389]
  %vm391 = vcmask 1047558
  %v392 = vsel %vm391, %v390, %v387
  %393 = vrot.lane.b32.xlu0 %v392, 16
  %v394 = vpop.permute.xlu0 %393
  %vm395 = vcmask 261248
  %s396 = scalar_lea.vmem %s1, 8
  %397 = vst.msk [vmem:[%s396] sm:$0xff] %vm395, %v394
  %s398 = scalar_lea.vmem %s0, 129
  %s399 = smov 3
  %v400 = vld [vmem:[%s398] ss:$8 sm:%s399]
  %401 = vrot.lane.b32.xlu0 %v400, 16
  %v402 = vpop.permute.xlu0 %401
  %vm403 = vcmask 261248
  %s404 = scalar_lea.vmem %s1, 16
  %405 = vst.msk [vmem:[%s404] ss:$8 sm:$0x3] %vm403, %v402

// kernel: tile.44
$region0: #{tile.44}
  %s0 = inlined_call_operand.vmem [shape: f32[4,16,16], index: 0, kind: input, shape index: {}]
  %s1 = inlined_call_operand.vmem [shape: f32[4,256], index: 1, kind: output, shape index: {}]
  $region1: #{tile.44} parent=0
    #allocation0 [shape = 'u8[8192]{0}', space=vmem, size = 0x2000, scoped, tag = 'scoped mem for output reshape']
    %v2 = vld [vmem:[%s0] ss:$8 sm:$0xf]
    %v3 = vld [vmem:[%s0] ss:$8 sm:$0xf0]
    %vm4 = vcmask 1047556
    %v5 = vsel %vm4, %v3, %v2
    %vm6 = vcmask 130048
    %7 = vst.msk [vmem:[#allocation0] ss:$8 sm:$0x3] %vm6, %v5
    %s8 = scalar_lea.vmem [#allocation0], 4294967281
    %9 = vst.msk [vmem:[%s8] ss:$8 sm:$0xc] %vm6, %v5
    %s10 = scalar_lea.vmem [#allocation0], 4294967266
    %11 = vst.msk [vmem:[%s10] ss:$8 sm:$0x30] %vm6, %v5
    %s12 = scalar_lea.vmem [#allocation0], 4294967251
    %13 = vst.msk [vmem:[%s12] ss:$8 sm:$0xc0] %vm6, %v5
    %s14 = scalar_lea.vmem %s0, 7
    %s15 = smov 3
    %v16 = vld [vmem:[%s14] ss:$16 sm:%s15]
    %s17 = scalar_lea.vmem %s0, 7
    %s18 = smov 12
    %v19 = vld [vmem:[%s17] ss:$16 sm:%s18]
    %vm20 = vcmask 1043458
    %v21 = vsel %vm20, %v19, %v16
    %s22 = scalar_lea.vmem %s0, 4294967247
    %s23 = smov 48
    %v24 = vld [vmem:[%s22] ss:$16 sm:%s23]
    %vm25 = vcmask 1045508
    %v26 = vsel %vm25, %v24, %v21
    %s27 = scalar_lea.vmem %s0, 4294967247
    %s28 = smov 192
    %v29 = vld [vmem:[%s27] ss:$16 sm:%s28]
    %vm30 = vcmask 1047558
    %v31 = vsel %vm30, %v29, %v26
    %32 = vrot.lane.b32.xlu0 %v31, 112
    %v33 = vpop.permute.xlu0 %32
    %vm34 = vcmask 1048448
    %35 = vst.msk [vmem:[#allocation0] sm:$0xf] %vm34, %v33
    %s36 = scalar_lea.vmem [#allocation0], 4
    %37 = vst.msk [vmem:[%s36] sm:$0xf0] %vm34, %v33
    %s38 = scalar_lea.vmem %s0, 6
    %s39 = smov 3
    %v40 = vld [vmem:[%s38] ss:$16 sm:%s39]
    %s41 = scalar_lea.vmem %s0, 6
    %s42 = smov 12
    %v43 = vld [vmem:[%s41] ss:$16 sm:%s42]
    %vm44 = vcmask 1043458
    %v45 = vsel %vm44, %v43, %v40
    %s46 = scalar_lea.vmem %s0, 4294967246
    %s47 = smov 48
    %v48 = vld [vmem:[%s46] ss:$16 sm:%s47]
    %vm49 = vcmask 1045508
    %v50 = vsel %vm49, %v48, %v45
    %s51 = scalar_lea.vmem %s0, 4294967246
    %s52 = smov 192
    %v53 = vld [vmem:[%s51] ss:$16 sm:%s52]
    %vm54 = vcmask 1047558
    %v55 = vsel %vm54, %v53, %v50
    %56 = vrot.lane.b32.xlu0 %v55, 96
    %v57 = vpop.permute.xlu0 %56
    %vm58 = vcmask 917248
    %59 = vst.msk [vmem:[#allocation0] sm:$0xf] %vm58, %v57
    %s60 = scalar_lea.vmem [#allocation0], 4
    %61 = vst.msk [vmem:[%s60] sm:$0xf0] %vm58, %v57
    %s62 = scalar_lea.vmem %s0, 5
    %s63 = smov 3
    %v64 = vld [vmem:[%s62] ss:$16 sm:%s63]
    %s65 = scalar_lea.vmem %s0, 5
    %s66 = smov 12
    %v67 = vld [vmem:[%s65] ss:$16 sm:%s66]
    %vm68 = vcmask 1043458
    %v69 = vsel %vm68, %v67, %v64
    %s70 = scalar_lea.vmem %s0, 4294967245
    %s71 = smov 48
    %v72 = vld [vmem:[%s70] ss:$16 sm:%s71]
    %vm73 = vcmask 1045508
    %v74 = vsel %vm73, %v72, %v69
    %s75 = scalar_lea.vmem %s0, 4294967245
    %s76 = smov 192
    %v77 = vld [vmem:[%s75] ss:$16 sm:%s76]
    %vm78 = vcmask 1047558
    %v79 = vsel %vm78, %v77, %v74
    %80 = vrot.lane.b32.xlu0 %v79, 80
    %v81 = vpop.permute.xlu0 %80
    %vm82 = vcmask 786048
    %83 = vst.msk [vmem:[#allocation0] sm:$0xf] %vm82, %v81
    %s84 = scalar_lea.vmem [#allocation0], 4
    %85 = vst.msk [vmem:[%s84] sm:$0xf0] %vm82, %v81
    %s86 = scalar_lea.vmem %s0, 4
    %s87 = smov 3
    %v88 = vld [vmem:[%s86] ss:$16 sm:%s87]
    %s89 = scalar_lea.vmem %s0, 4
    %s90 = smov 12
    %v91 = vld [vmem:[%s89] ss:$16 sm:%s90]
    %vm92 = vcmask 1043458
    %v93 = vsel %vm92, %v91, %v88
    %s94 = scalar_lea.vmem %s0, 4294967244
    %s95 = smov 48
    %v96 = vld [vmem:[%s94] ss:$16 sm:%s95]
    %vm97 = vcmask 1045508
    %v98 = vsel %vm97, %v96, %v93
    %s99 = scalar_lea.vmem %s0, 4294967244
    %s100 = smov 192
    %v101 = vld [vmem:[%s99] ss:$16 sm:%s100]
    %vm102 = vcmask 1047558
    %v103 = vsel %vm102, %v101, %v98
    %104 = vrot.lane.b32.xlu0 %v103, 64
    %v105 = vpop.permute.xlu0 %104
    %vm106 = vcmask 654848
    %107 = vst.msk [vmem:[#allocation0] sm:$0xf] %vm106, %v105
    %s108 = scalar_lea.vmem [#allocation0], 4
    %109 = vst.msk [vmem:[%s108] sm:$0xf0] %vm106, %v105
    %s110 = scalar_lea.vmem %s0, 3
    %s111 = smov 3
    %v112 = vld [vmem:[%s110] ss:$16 sm:%s111]
    %s113 = scalar_lea.vmem %s0, 3
    %s114 = smov 12
    %v115 = vld [vmem:[%s113] ss:$16 sm:%s114]
    %vm116 = vcmask 1043458
    %v117 = vsel %vm116, %v115, %v112
    %s118 = scalar_lea.vmem %s0, 4294967243
    %s119 = smov 48
    %v120 = vld [vmem:[%s118] ss:$16 sm:%s119]
    %vm121 = vcmask 1045508
    %v122 = vsel %vm121, %v120, %v117
    %s123 = scalar_lea.vmem %s0, 4294967243
    %s124 = smov 192
    %v125 = vld [vmem:[%s123] ss:$16 sm:%s124]
    %vm126 = vcmask 1047558
    %v127 = vsel %vm126, %v125, %v122
    %128 = vrot.lane.b32.xlu0 %v127, 48
    %v129 = vpop.permute.xlu0 %128
    %vm130 = vcmask 523648
    %131 = vst.msk [vmem:[#allocation0] sm:$0xf] %vm130, %v129
    %s132 = scalar_lea.vmem [#allocation0], 4
    %133 = vst.msk [vmem:[%s132] sm:$0xf0] %vm130, %v129
    %s134 = scalar_lea.vmem %s0, 2
    %s135 = smov 3
    %v136 = vld [vmem:[%s134] ss:$16 sm:%s135]
    %s137 = scalar_lea.vmem %s0, 2
    %s138 = smov 12
    %v139 = vld [vmem:[%s137] ss:$16 sm:%s138]
    %vm140 = vcmask 1043458
    %v141 = vsel %vm140, %v139, %v136
    %s142 = scalar_lea.vmem %s0, 4294967242
    %s143 = smov 48
    %v144 = vld [vmem:[%s142] ss:$16 sm:%s143]
    %vm145 = vcmask 1045508
    %v146 = vsel %vm145, %v144, %v141
    %s147 = scalar_lea.vmem %s0, 4294967242
    %s148 = smov 192
    %v149 = vld [vmem:[%s147] ss:$16 sm:%s148]
    %vm150 = vcmask 1047558
    %v151 = vsel %vm150, %v149, %v146
    %152 = vrot.lane.b32.xlu0 %v151, 32
    %v153 = vpop.permute.xlu0 %152
    %vm154 = vcmask 392448
    %155 = vst.msk [vmem:[#allocation0] sm:$0xf] %vm154, %v153
    %s156 = scalar_lea.vmem [#allocation0], 4
    %157 = vst.msk [vmem:[%s156] sm:$0xf0] %vm154, %v153
    %s158 = scalar_lea.vmem %s0, 1
    %s159 = smov 3
    %v160 = vld [vmem:[%s158] ss:$16 sm:%s159]
    %s161 = scalar_lea.vmem %s0, 1
    %s162 = smov 12
    %v163 = vld [vmem:[%s161] ss:$16 sm:%s162]
    %vm164 = vcmask 1043458
    %v165 = vsel %vm164, %v163, %v160
    %s166 = scalar_lea.vmem %s0, 4294967241
    %s167 = smov 48
    %v168 = vld [vmem:[%s166] ss:$16 sm:%s167]
    %vm169 = vcmask 1045508
    %v170 = vsel %vm169, %v168, %v165
    %s171 = scalar_lea.vmem %s0, 4294967241
    %s172 = smov 192
    %v173 = vld [vmem:[%s171] ss:$16 sm:%s172]
    %vm174 = vcmask 1047558
    %v175 = vsel %vm174, %v173, %v170
    %176 = vrot.lane.b32.xlu0 %v175, 16
    %v177 = vpop.permute.xlu0 %176
    %vm178 = vcmask 261248
    %179 = vst.msk [vmem:[#allocation0] sm:$0xf] %vm178, %v177
    %s180 = scalar_lea.vmem [#allocation0], 4
    %181 = vst.msk [vmem:[%s180] sm:$0xf0] %vm178, %v177
    %s183 = sshll.u32 1, 4
    %s184 = ssub.s32 %s183, 1
    %v186 = vld [vmem:[#allocation0] sm:%s184]
    %s187 = sshll.u32 1, 4
    %s188 = ssub.s32 %s187, 1
    %189 = vst [vmem:[%s1] sm:%s188] %v186
    %s190 = scalar_lea.vmem [#allocation0], 8
    %v191 = vld [vmem:[%s190] sm:%s184]
    %s192 = sshll.u32 1, 4
    %s193 = ssub.s32 %s192, 1
    %s194 = scalar_lea.vmem %s1, 4
    %195 = vst [vmem:[%s194] sm:%s193] %v191

// kernel: depthwise_separable.1
$region0: #{depthwise_separable.1}
  #allocation0 [shape = 'u32[]', space=smem, size = 0x4, offset = 0x4, fixed_abs, tag = 'smem constant byte address 0x4 - core index']
  #allocation1 [shape = 'u32[144,128]{1,0:T(1,128)}', space=vmem, size = 0x12000, scoped, tag = 'internal scratch']
  %s0 = inlined_call_operand.vmem [shape: f32[2,18,288], index: 0, kind: input, shape index: {}]
  %s1 = inlined_call_operand.vmem [shape: f32[9,256], index: 1, kind: input, shape index: {}]
  %s2 = inlined_call_operand.vmem [shape: f32[1,256], index: 2, kind: input, shape index: {}]
  %s3 = inlined_call_operand.vmem [shape: f32[4,256], index: 3, kind: input, shape index: {}]
  %s4 = inlined_call_operand.vmem [shape: f32[4,1], index: 4, kind: input, shape index: {}]
  %s5 = inlined_call_operand.vmem [shape: f32[4,256], index: 5, kind: input, shape index: {}]
  %s6 = inlined_call_operand.vmem [shape: f32[1,256], index: 6, kind: input, shape index: {}]
  %s7 = inlined_call_operand.vmem [shape: bf16[256,512], index: 7, kind: input, shape index: {}]
  %s8 = inlined_call_operand.vmem [shape: f32[1,512], index: 8, kind: input, shape index: {}]
  %s9 = inlined_call_operand.vmem [shape: f32[2,16,512], index: 9, kind: output, shape index: {}]
  %s10 = sld [smem:[#allocation0]]
  $region69: #{depthwise_separable.1} parent=0
    _
  %s12 = ssub.s32 1, %s10
  %s13 = scalar_select 0, %s12, %s10
  loop: start=0, step=1, limit=4
  $region2: #{depthwise_separable.1} parent=0 // loop_pre_header
    _
  $region3: #{depthwise_separable.1} parent=0 // loop_header
    %s15 = sphi 0, %s19
    %p16 = scmp.ge.s32.totalorder %s15, 4
    %s25 = sphi 0, %s27
    %s28 = sphi 0, %s25
    %s29 = sphi 0, %s28
    %s45 = sphi 0, %s29
    %s49 = sphi 0, %s49
    %s51 = sphi 0, %s49
    %s52 = sphi 0, %s51
    %s66 = sphi 0, %s52
    %s70 = sphi 0, %s70
    %s72 = sphi 0, %s70
    %s73 = sphi 0, %s72
    %s87 = sphi 0, %s73
    %s91 = sphi 0, %s91
    %s93 = sphi 0, %s91
    %s94 = sphi 0, %s93
    %s108 = sphi 0, %s94
    %s112 = sphi 0, %s112
    %s114 = sphi 0, %s112
    %s115 = sphi 0, %s114
    %s129 = sphi 0, %s115
    %s133 = sphi 0, %s133
    %s135 = sphi 0, %s133
    %s136 = sphi 0, %s135
    %s150 = sphi 0, %s136
    %s154 = sphi 0, %s154
    %s156 = sphi 0, %s154
    %s157 = sphi 0, %s156
    %s171 = sphi 0, %s157
    %s175 = sphi 0, %s175
    %s177 = sphi 0, %s175
    %s178 = sphi 0, %s177
    %s192 = sphi 0, %s178
    %s196 = sphi 0, %s196
    %s198 = sphi 0, %s196
    %s199 = sphi 0, %s198
    %s213 = sphi 0, %s199
    %s219 = sphi 0, %s221
    %s222 = sphi 0, %s219
    %s223 = sphi 0, %s222
    %s239 = sphi 0, %s223
  $region4: #{depthwise_separable.1} parent=0 // loop_header_branch
    %18 = sbr.rel (%p16) target = $region8
  $region5: #{depthwise_separable.1} parent=0 // loop_body
    %s20 = ssub.s32 %s15, 1
    %s21 = ssub.s32 %s15, 2
    %s22 = sadd.s32 %s15, 1
    %s23 = ssub.s32 %s15, %s22
    %p24 = scmp.eq.s32.totalorder %s23, 0
    %s26 = sadd.s32 %s25, 1
    %s27 = scalar_select %p24, %s25, %s26
    %p30 = pneg %p24
    %p31 = scmp.eq.s32.totalorder %s15, 1
    %p32 = por %p30, %p31
    %p33 = scmp.ne.s32.totalorder %s25, %s28
    %p34 = scmp.eq.s32.totalorder %s15, 0
    %p35 = por %p33, %p34
    %p36 = scmp.ne.s32.totalorder %s25, %s28
    %p37 = scmp.eq.s32.totalorder %s20, 1
    %p38 = por %p36, %p37
    %p39 = scmp.ne.s32.totalorder %s28, %s29
    %p40 = scmp.eq.s32.totalorder %s20, 0
    %p41 = por %p39, %p40
    %p42 = scmp.ne.s32.totalorder %s28, %s29
    %p43 = scmp.eq.s32.totalorder %s21, 1
    %p44 = por %p42, %p43
    %p46 = scmp.ne.s32.totalorder %s29, %s45
    %p47 = scmp.eq.s32.totalorder %s21, 0
    %p48 = por %p46, %p47
    %s50 = sadd.s32 %s49, 1
    %p53 = scmp.eq.s32.totalorder %s15, 1
    %p54 = scmp.ne.s32.totalorder %s49, %s51
    %p55 = scmp.eq.s32.totalorder %s15, 0
    %p56 = por %p54, %p55
    %p57 = scmp.ne.s32.totalorder %s49, %s51
    %p58 = scmp.eq.s32.totalorder %s20, 1
    %p59 = por %p57, %p58
    %p60 = scmp.ne.s32.totalorder %s51, %s52
    %p61 = scmp.eq.s32.totalorder %s20, 0
    %p62 = por %p60, %p61
    %p63 = scmp.ne.s32.totalorder %s51, %s52
    %p64 = scmp.eq.s32.totalorder %s21, 1
    %p65 = por %p63, %p64
    %p67 = scmp.ne.s32.totalorder %s52, %s66
    %p68 = scmp.eq.s32.totalorder %s21, 0
    %p69 = por %p67, %p68
    %s71 = sadd.s32 %s70, 1
    %p74 = scmp.eq.s32.totalorder %s15, 1
    %p75 = scmp.ne.s32.totalorder %s70, %s72
    %p76 = scmp.eq.s32.totalorder %s15, 0
    %p77 = por %p75, %p76
    %p78 = scmp.ne.s32.totalorder %s70, %s72
    %p79 = scmp.eq.s32.totalorder %s20, 1
    %p80 = por %p78, %p79
    %p81 = scmp.ne.s32.totalorder %s72, %s73
    %p82 = scmp.eq.s32.totalorder %s20, 0
    %p83 = por %p81, %p82
    %p84 = scmp.ne.s32.totalorder %s72, %s73
    %p85 = scmp.eq.s32.totalorder %s21, 1
    %p86 = por %p84, %p85
    %p88 = scmp.ne.s32.totalorder %s73, %s87
    %p89 = scmp.eq.s32.totalorder %s21, 0
    %p90 = por %p88, %p89
    %s92 = sadd.s32 %s91, 1
    %p95 = scmp.eq.s32.totalorder %s15, 1
    %p96 = scmp.ne.s32.totalorder %s91, %s93
    %p97 = scmp.eq.s32.totalorder %s15, 0
    %p98 = por %p96, %p97
    %p99 = scmp.ne.s32.totalorder %s91, %s93
    %p100 = scmp.eq.s32.totalorder %s20, 1
    %p101 = por %p99, %p100
    %p102 = scmp.ne.s32.totalorder %s93, %s94
    %p103 = scmp.eq.s32.totalorder %s20, 0
    %p104 = por %p102, %p103
    %p105 = scmp.ne.s32.totalorder %s93, %s94
    %p106 = scmp.eq.s32.totalorder %s21, 1
    %p107 = por %p105, %p106
    %p109 = scmp.ne.s32.totalorder %s94, %s108
    %p110 = scmp.eq.s32.totalorder %s21, 0
    %p111 = por %p109, %p110
    %s113 = sadd.s32 %s112, 1
    %p116 = scmp.eq.s32.totalorder %s15, 1
    %p117 = scmp.ne.s32.totalorder %s112, %s114
    %p118 = scmp.eq.s32.totalorder %s15, 0
    %p119 = por %p117, %p118
    %p120 = scmp.ne.s32.totalorder %s112, %s114
    %p121 = scmp.eq.s32.totalorder %s20, 1
    %p122 = por %p120, %p121
    %p123 = scmp.ne.s32.totalorder %s114, %s115
    %p124 = scmp.eq.s32.totalorder %s20, 0
    %p125 = por %p123, %p124
    %p126 = scmp.ne.s32.totalorder %s114, %s115
    %p127 = scmp.eq.s32.totalorder %s21, 1
    %p128 = por %p126, %p127
    %p130 = scmp.ne.s32.totalorder %s115, %s129
    %p131 = scmp.eq.s32.totalorder %s21, 0
    %p132 = por %p130, %p131
    %s134 = sadd.s32 %s133, 1
    %p137 = scmp.eq.s32.totalorder %s15, 1
    %p138 = scmp.ne.s32.totalorder %s133, %s135
    %p139 = scmp.eq.s32.totalorder %s15, 0
    %p140 = por %p138, %p139
    %p141 = scmp.ne.s32.totalorder %s133, %s135
    %p142 = scmp.eq.s32.totalorder %s20, 1
    %p143 = por %p141, %p142
    %p144 = scmp.ne.s32.totalorder %s135, %s136
    %p145 = scmp.eq.s32.totalorder %s20, 0
    %p146 = por %p144, %p145
    %p147 = scmp.ne.s32.totalorder %s135, %s136
    %p148 = scmp.eq.s32.totalorder %s21, 1
    %p149 = por %p147, %p148
    %p151 = scmp.ne.s32.totalorder %s136, %s150
    %p152 = scmp.eq.s32.totalorder %s21, 0
    %p153 = por %p151, %p152
    %s155 = sadd.s32 %s154, 1
    %p158 = scmp.eq.s32.totalorder %s15, 1
    %p159 = scmp.ne.s32.totalorder %s154, %s156
    %p160 = scmp.eq.s32.totalorder %s15, 0
    %p161 = por %p159, %p160
    %p162 = scmp.ne.s32.totalorder %s154, %s156
    %p163 = scmp.eq.s32.totalorder %s20, 1
    %p164 = por %p162, %p163
    %p165 = scmp.ne.s32.totalorder %s156, %s157
    %p166 = scmp.eq.s32.totalorder %s20, 0
    %p167 = por %p165, %p166
    %p168 = scmp.ne.s32.totalorder %s156, %s157
    %p169 = scmp.eq.s32.totalorder %s21, 1
    %p170 = por %p168, %p169
    %p172 = scmp.ne.s32.totalorder %s157, %s171
    %p173 = scmp.eq.s32.totalorder %s21, 0
    %p174 = por %p172, %p173
    %s176 = sadd.s32 %s175, 1
    %p179 = scmp.eq.s32.totalorder %s15, 1
    %p180 = scmp.ne.s32.totalorder %s175, %s177
    %p181 = scmp.eq.s32.totalorder %s15, 0
    %p182 = por %p180, %p181
    %p183 = scmp.ne.s32.totalorder %s175, %s177
    %p184 = scmp.eq.s32.totalorder %s20, 1
    %p185 = por %p183, %p184
    %p186 = scmp.ne.s32.totalorder %s177, %s178
    %p187 = scmp.eq.s32.totalorder %s20, 0
    %p188 = por %p186, %p187
    %p189 = scmp.ne.s32.totalorder %s177, %s178
    %p190 = scmp.eq.s32.totalorder %s21, 1
    %p191 = por %p189, %p190
    %p193 = scmp.ne.s32.totalorder %s178, %s192
    %p194 = scmp.eq.s32.totalorder %s21, 0
    %p195 = por %p193, %p194
    %s197 = sadd.s32 %s196, 1
    %p200 = scmp.eq.s32.totalorder %s15, 1
    %p201 = scmp.ne.s32.totalorder %s196, %s198
    %p202 = scmp.eq.s32.totalorder %s15, 0
    %p203 = por %p201, %p202
    %p204 = scmp.ne.s32.totalorder %s196, %s198
    %p205 = scmp.eq.s32.totalorder %s20, 1
    %p206 = por %p204, %p205
    %p207 = scmp.ne.s32.totalorder %s198, %s199
    %p208 = scmp.eq.s32.totalorder %s20, 0
    %p209 = por %p207, %p208
    %p210 = scmp.ne.s32.totalorder %s198, %s199
    %p211 = scmp.eq.s32.totalorder %s21, 1
    %p212 = por %p210, %p211
    %p214 = scmp.ne.s32.totalorder %s199, %s213
    %p215 = scmp.eq.s32.totalorder %s21, 0
    %p216 = por %p214, %p215
    %s217 = ssub.s32 %s15, %s22
    %p218 = scmp.eq.s32.totalorder %s217, 0
    %s220 = sadd.s32 %s219, 1
    %s221 = scalar_select %p218, %s219, %s220
    %p224 = pneg %p218
    %p225 = scmp.eq.s32.totalorder %s15, 1
    %p226 = por %p224, %p225
    %p227 = scmp.ne.s32.totalorder %s219, %s222
    %p228 = scmp.eq.s32.totalorder %s15, 0
    %p229 = por %p227, %p228
    %p230 = scmp.ne.s32.totalorder %s219, %s222
    %p231 = scmp.eq.s32.totalorder %s20, 1
    %p232 = por %p230, %p231
    %p233 = scmp.ne.s32.totalorder %s222, %s223
    %p234 = scmp.eq.s32.totalorder %s20, 0
    %p235 = por %p233, %p234
    %p236 = scmp.ne.s32.totalorder %s222, %s223
    %p237 = scmp.eq.s32.totalorder %s21, 1
    %p238 = por %p236, %p237
    %p240 = scmp.ne.s32.totalorder %s223, %s239
    %p241 = scmp.eq.s32.totalorder %s21, 0
    %p242 = por %p240, %p241
    %p243 = scmp.le.s32.totalorder 1, %s15
    %p244 = scmp.lt.s32.totalorder %s15, 3
    %p245 = pnand %p243, %p244
    %p246 = pneg %p245
    // Predicated region
    $region9: #{depthwise_separable.1} parent=5 // pred_check
      _
    $region10: #{depthwise_separable.1} parent=5 // pred_check_branch
      %248 = sbr.rel (%p245) target = $region12
    $region11: #{depthwise_separable.1} parent=5 // pred_region
      %s249 = ssub.s32 %s15, 1
      // Predicated region
      $region13: #{depthwise_separable.1} parent=11 // pred_check
        %p250 = pneg %p62
      $region14: #{depthwise_separable.1} parent=11 // pred_check_branch
        %252 = sbr.rel (%p250) target = $region16
      $region15: #{depthwise_separable.1} parent=11 // pred_region
        _
      $region16: #{depthwise_separable.1} parent=11 // pred_fallthru
        _
      // Predicated region
      $region17: #{depthwise_separable.1} parent=11 // pred_check
        %p253 = pneg %p83
      $region18: #{depthwise_separable.1} parent=11 // pred_check_branch
        %255 = sbr.rel (%p253) target = $region20
      $region19: #{depthwise_separable.1} parent=11 // pred_region
        _
      $region20: #{depthwise_separable.1} parent=11 // pred_fallthru
        _
      // Predicated region
      $region21: #{depthwise_separable.1} parent=11 // pred_check
        %p256 = pneg %p104
      $region22: #{depthwise_separable.1} parent=11 // pred_check_branch
        %258 = sbr.rel (%p256) target = $region24
      $region23: #{depthwise_separable.1} parent=11 // pred_region
        _
      $region24: #{depthwise_separable.1} parent=11 // pred_fallthru
        _
      // Predicated region
      $region25: #{depthwise_separable.1} parent=11 // pred_check
        %p259 = pneg %p125
      $region26: #{depthwise_separable.1} parent=11 // pred_check_branch
        %261 = sbr.rel (%p259) target = $region28
      $region27: #{depthwise_separable.1} parent=11 // pred_region
        _
      $region28: #{depthwise_separable.1} parent=11 // pred_fallthru
        _
      // Predicated region
      $region29: #{depthwise_separable.1} parent=11 // pred_check
        %p262 = pneg %p146
      $region30: #{depthwise_separable.1} parent=11 // pred_check_branch
        %264 = sbr.rel (%p262) target = $region32
      $region31: #{depthwise_separable.1} parent=11 // pred_region
        _
      $region32: #{depthwise_separable.1} parent=11 // pred_fallthru
        _
      // Predicated region
      $region33: #{depthwise_separable.1} parent=11 // pred_check
        %p265 = pneg %p167
      $region34: #{depthwise_separable.1} parent=11 // pred_check_branch
        %267 = sbr.rel (%p265) target = $region36
      $region35: #{depthwise_separable.1} parent=11 // pred_region
        _
      $region36: #{depthwise_separable.1} parent=11 // pred_fallthru
        _
      // Predicated region
      $region37: #{depthwise_separable.1} parent=11 // pred_check
        %p268 = pneg %p188
      $region38: #{depthwise_separable.1} parent=11 // pred_check_branch
        %270 = sbr.rel (%p268) target = $region40
      $region39: #{depthwise_separable.1} parent=11 // pred_region
        _
      $region40: #{depthwise_separable.1} parent=11 // pred_fallthru
        _
      // Predicated region
      $region41: #{depthwise_separable.1} parent=11 // pred_check
        %p271 = pneg %p209
      $region42: #{depthwise_separable.1} parent=11 // pred_check_branch
        %273 = sbr.rel (%p271) target = $region44
      $region43: #{depthwise_separable.1} parent=11 // pred_region
        _
      $region44: #{depthwise_separable.1} parent=11 // pred_fallthru
        _
    $region12: #{depthwise_separable.1} parent=5 // pred_fallthru
      _
    %p274 = scmp.lt.s32.totalorder %s15, 2
    // Predicated region
    $region45: #{depthwise_separable.1} parent=5 // pred_check
      %p275 = pneg %p274
    $region46: #{depthwise_separable.1} parent=5 // pred_check_branch
      %277 = sbr.rel (%p275) target = $region48
    $region47: #{depthwise_separable.1} parent=5 // pred_region
      // Predicated region
      $region49: #{depthwise_separable.1} parent=47 // pred_check
        %p278 = pneg %p35
      $region50: #{depthwise_separable.1} parent=47 // pred_check_branch
        %280 = sbr.rel (%p278) target = $region52
      $region51: #{depthwise_separable.1} parent=47 // pred_region
        %p281 = scmp.lt.s32.totalorder %s15, 1
        %s282 = scalar_select %p281, %s15, 1
        %s283 = smul.addr %s282, 9
        %s284 = smul.addr %s283, 8
        %s285 = scalar_lea.vmem %s0, %s284
      $region52: #{depthwise_separable.1} parent=47 // pred_fallthru
        _
    $region48: #{depthwise_separable.1} parent=5 // pred_fallthru
      _
    %p286 = scmp.le.s32.totalorder 1, %s15
    %p287 = scmp.lt.s32.totalorder %s15, 3
    %p288 = pnand %p286, %p287
    %p289 = pneg %p288
    // Predicated region
    $region53: #{depthwise_separable.1} parent=5 // pred_check
      _
    $region54: #{depthwise_separable.1} parent=5 // pred_check_branch
      %291 = sbr.rel (%p288) target = $region56
    $region55: #{depthwise_separable.1} parent=5 // pred_region
      %s292 = ssub.s32 %s15, 1
      %p293 = scmp.lt.s32.totalorder %s20, 1
      %s294 = scalar_select %p293, %s20, 1
      %s295 = smul.addr %s294, 9
      %s296 = smul.addr %s295, 8
      %s297 = scalar_lea.vmem %s0, %s296
      %p298 = pneg %p41
      %p299 = pneg %p38
      %p300 = pneg %p62
      %p301 = pneg %p59
      %p302 = pneg %p83
      %p303 = pneg %p80
      %p304 = pneg %p104
      %p305 = pneg %p101
      %p306 = pneg %p125
      %p307 = pneg %p122
      %p308 = pneg %p146
      %p309 = pneg %p143
      %p310 = pneg %p167
      %p311 = pneg %p164
      %p312 = pneg %p188
      %p313 = pneg %p185
      %p314 = pneg %p209
      %p315 = pneg %p206
      %p316 = pneg %p235
      %p317 = pneg %p232
      %p318 = scmp.lt.s32.totalorder %s20, 1
      %s319 = scalar_select %p318, %s20, 1
      %s320 = smul.addr %s319, 8
      %s321 = smul.addr %s320, 8
      %s322 = scalar_lea.vmem %s9, %s321
      %p323 = scmp.lt.s32.totalorder %s20, 1
      %s324 = scalar_select %p323, %s20, 1
      %s325 = smul.addr %s324, 9
      %s326 = smul.addr %s325, 8
      %s327 = scalar_lea.vmem %s0, %s326
      %p328 = scmp.lt.s32.totalorder %s20, 1
      %s329 = scalar_select %p328, %s20, 1
      %s330 = smul.addr %s329, 8
      %s331 = smul.addr %s330, 8
      %s332 = scalar_lea.vmem %s9, %s331
      %v333 = vld [vmem:[%s327] sm:$0xff]
      %v334 = vld [vmem:[%s327 + $0x8] sm:$0xff]
      %v335 = vld [vmem:[%s327 + $0x10] sm:$0xff]
      %v336 = vld [vmem:[%s327 + $0x18] sm:$0xff]
      %v337 = vld [vmem:[%s327 + $0x20] sm:$0xff]
      %v338 = vld [vmem:[%s327 + $0x28] sm:$0xff]
      %v339 = vld [vmem:[%s327 + $0x30] sm:$0x3]
      %v340 = vld [vmem:[%s327 + $0x38] sm:$0x3]
      %v341 = vld [vmem:[%s327 + $0x40] sm:$0x3]
      %v342 = vld [vmem:[%s1] sm:$0xff]
      %v343 = vld [vmem:[%s1 + $0x8] sm:$0xff]
      %v344 = vld [vmem:[%s1 + $0x10] sm:$0x1]
      %v345 = vld [vmem:[%s1 + $0x18] sm:$0x1]
      %v346 = vlaneseq
      %v347 = vshrl.u32 %v346, 7
      %v348 = vsub.s32 0, %v347
      %v349 = vrot.slane %v342, %v348
      %v350 = vlaneseq
      %v351 = vshrl.u32 %v350, 7
      %v352 = vsub.s32 0, %v351
      %v353 = vrot.slane %v343, %v352
      %v354 = vmul.f32 %v333, %v349
      %v355 = vmul.f32 %v334, %v353
      %v356 = vmul.f32 %v336, %v349
      %v357 = vmul.f32 %v337, %v353
      %v358 = vadd.f32 %v354, 0.0
      %v359 = vadd.f32 %v355, 0.0
      %v360 = vadd.f32 %v356, 0.0
      %v361 = vadd.f32 %v357, 0.0
      %v362 = vlaneseq
      %v363 = vshrl.u32 %v362, 7
      %v364 = vsub.s32 1, %v363
      %v365 = vrot.slane %v342, %v364
      %v366 = vlaneseq
      %v367 = vshrl.u32 %v366, 7
      %v368 = vsub.s32 1, %v367
      %v369 = vrot.slane %v343, %v368
      %372 = vrot.lane.b32.xlu0 %v365, 16
      %v373 = vpop.permute.xlu0 %372
      %374 = vrot.lane.b32.xlu0 %v369, 16
      %v375 = vpop.permute.xlu0 %374
      %vm376 = vcmask 130048
      %v377 = vsel %vm376, %v373, %v375
      %v381 = vmul.f32 %v333, %v373
      %v382 = vmul.f32 %v334, %v377
      %v383 = vmul.f32 %v335, %v375
      %v384 = vmul.f32 %v336, %v373
      %v385 = vmul.f32 %v337, %v377
      %v386 = vmul.f32 %v338, %v375
      %393 = vrot.lane.b32.xlu0 %v381, 112
      %v394 = vpop.permute.xlu0 %393
      %395 = vrot.lane.b32.xlu0 %v382, 112
      %v396 = vpop.permute.xlu0 %395
      %397 = vrot.lane.b32.xlu0 %v383, 112
      %v398 = vpop.permute.xlu0 %397
      %399 = vrot.lane.b32.xlu0 %v384, 112
      %v400 = vpop.permute.xlu0 %399
      %401 = vrot.lane.b32.xlu0 %v385, 112
      %v402 = vpop.permute.xlu0 %401
      %403 = vrot.lane.b32.xlu0 %v386, 112
      %v404 = vpop.permute.xlu0 %403
      %vm405 = vcmask 916480
      %v406 = vsel %vm405, %v394, %v396
      %v407 = vsel %vm405, %v396, %v398
      %v408 = vsel %vm405, %v400, %v402
      %v409 = vsel %vm405, %v402, %v404
      %v414 = vadd.f32 %v358, %v406
      %v415 = vadd.f32 %v359, %v407
      %v416 = vadd.f32 %v360, %v408
      %v417 = vadd.f32 %v361, %v409
      %v418 = vlaneseq
      %v419 = vshrl.u32 %v418, 7
      %v420 = vsub.s32 2, %v419
      %v421 = vrot.slane %v342, %v420
      %v422 = vlaneseq
      %v423 = vshrl.u32 %v422, 7
      %v424 = vsub.s32 2, %v423
      %v425 = vrot.slane %v343, %v424
      %428 = vrot.lane.b32.xlu0 %v421, 32
      %v429 = vpop.permute.xlu0 %428
      %430 = vrot.lane.b32.xlu0 %v425, 32
      %v431 = vpop.permute.xlu0 %430
      %vm432 = vcmask 261120
      %v433 = vsel %vm432, %v429, %v431
      %v437 = vmul.f32 %v333, %v429
      %v438 = vmul.f32 %v334, %v433
      %v439 = vmul.f32 %v335, %v431
      %v440 = vmul.f32 %v336, %v429
      %v441 = vmul.f32 %v337, %v433
      %v442 = vmul.f32 %v338, %v431
      %449 = vrot.lane.b32.xlu0 %v437, 96
      %v450 = vpop.permute.xlu0 %449
      %451 = vrot.lane.b32.xlu0 %v438, 96
      %v452 = vpop.permute.xlu0 %451
      %453 = vrot.lane.b32.xlu0 %v439, 96
      %v454 = vpop.permute.xlu0 %453
      %455 = vrot.lane.b32.xlu0 %v440, 96
      %v456 = vpop.permute.xlu0 %455
      %457 = vrot.lane.b32.xlu0 %v441, 96
      %v458 = vpop.permute.xlu0 %457
      %459 = vrot.lane.b32.xlu0 %v442, 96
      %v460 = vpop.permute.xlu0 %459
      %vm461 = vcmask 785408
      %v462 = vsel %vm461, %v450, %v452
      %v463 = vsel %vm461, %v452, %v454
      %v464 = vsel %vm461, %v456, %v458
      %v465 = vsel %vm461, %v458, %v460
      %v470 = vadd.f32 %v414, %v462
      %v471 = vadd.f32 %v415, %v463
      %v472 = vadd.f32 %v416, %v464
      %v473 = vadd.f32 %v417, %v465
      %v474 = vlaneseq
      %v475 = vshrl.u32 %v474, 7
      %v476 = vsub.s32 3, %v475
      %v477 = vrot.slane %v342, %v476
      %v478 = vlaneseq
      %v479 = vshrl.u32 %v478, 7
      %v480 = vsub.s32 3, %v479
      %v481 = vrot.slane %v343, %v480
      %v482 = vmul.f32 %v333, %v477
      %v483 = vmul.f32 %v334, %v481
      %v484 = vmul.f32 %v336, %v477
      %v485 = vmul.f32 %v337, %v481
      %v486 = vmul.f32 %v339, %v477
      %v487 = vmul.f32 %v340, %v481
      %vm494 = vcmask 1046528
      %v495 = vrot.slane %v482, 1
      %v496 = vrot.slane %v484, 1
      %v497 = vsel %vm494, %v495, %v496
      %v498 = vrot.slane %v483, 1
      %v499 = vrot.slane %v485, 1
      %v500 = vsel %vm494, %v498, %v499
      %v501 = vrot.slane %v486, 1
      %v502 = vsel %vm494, %v496, %v501
      %v503 = vrot.slane %v487, 1
      %v504 = vsel %vm494, %v499, %v503
      %v509 = vadd.f32 %v470, %v497
      %v510 = vadd.f32 %v471, %v500
      %v511 = vadd.f32 %v472, %v502
      %v512 = vadd.f32 %v473, %v504
      %v513 = vlaneseq
      %v514 = vshrl.u32 %v513, 7
      %v515 = vsub.s32 4, %v514
      %v516 = vrot.slane %v342, %v515
      %v517 = vlaneseq
      %v518 = vshrl.u32 %v517, 7
      %v519 = vsub.s32 4, %v518
      %v520 = vrot.slane %v343, %v519
      %523 = vrot.lane.b32.xlu0 %v516, 16
      %v524 = vpop.permute.xlu0 %523
      %525 = vrot.lane.b32.xlu0 %v520, 16
      %v526 = vpop.permute.xlu0 %525
      %v527 = vsel %vm376, %v524, %v526
      %v531 = vmul.f32 %v333, %v524
      %v532 = vmul.f32 %v334, %v527
      %v533 = vmul.f32 %v335, %v526
      %v534 = vmul.f32 %v336, %v524
      %v535 = vmul.f32 %v337, %v527
      %v536 = vmul.f32 %v338, %v526
      %v537 = vmul.f32 %v339, %v524
      %v538 = vmul.f32 %v340, %v527
      %v539 = vmul.f32 %v341, %v526
      %v549 = vrot.slane %v531, 1
      %v550 = vrot.slane %v534, 1
      %v551 = vsel %vm494, %v549, %v550
      %v552 = vrot.slane %v532, 1
      %v553 = vrot.slane %v535, 1
      %v554 = vsel %vm494, %v552, %v553
      %v555 = vrot.slane %v533, 1
      %v556 = vrot.slane %v536, 1
      %v557 = vsel %vm494, %v555, %v556
      %v558 = vrot.slane %v537, 1
      %v559 = vsel %vm494, %v550, %v558
      %v560 = vrot.slane %v538, 1
      %v561 = vsel %vm494, %v553, %v560
      %v562 = vrot.slane %v539, 1
      %v563 = vsel %vm494, %v556, %v562
      %564 = vrot.lane.b32.xlu0 %v551, 112
      %v565 = vpop.permute.xlu0 %564
      %566 = vrot.lane.b32.xlu0 %v554, 112
      %v567 = vpop.permute.xlu0 %566
      %568 = vrot.lane.b32.xlu0 %v557, 112
      %v569 = vpop.permute.xlu0 %568
      %570 = vrot.lane.b32.xlu0 %v559, 112
      %v571 = vpop.permute.xlu0 %570
      %572 = vrot.lane.b32.xlu0 %v561, 112
      %v573 = vpop.permute.xlu0 %572
      %574 = vrot.lane.b32.xlu0 %v563, 112
      %v575 = vpop.permute.xlu0 %574
      %v576 = vsel %vm405, %v565, %v567
      %v577 = vsel %vm405, %v567, %v569
      %v578 = vsel %vm405, %v571, %v573
      %v579 = vsel %vm405, %v573, %v575
      %v584 = vadd.f32 %v509, %v576
      %v585 = vadd.f32 %v510, %v577
      %v586 = vadd.f32 %v511, %v578
      %v587 = vadd.f32 %v512, %v579
      %v588 = vlaneseq
      %v589 = vshrl.u32 %v588, 7
      %v590 = vsub.s32 5, %v589
      %v591 = vrot.slane %v342, %v590
      %v592 = vlaneseq
      %v593 = vshrl.u32 %v592, 7
      %v594 = vsub.s32 5, %v593
      %v595 = vrot.slane %v343, %v594
      %598 = vrot.lane.b32.xlu0 %v591, 32
      %v599 = vpop.permute.xlu0 %598
      %600 = vrot.lane.b32.xlu0 %v595, 32
      %v601 = vpop.permute.xlu0 %600
      %v602 = vsel %vm432, %v599, %v601
      %v606 = vmul.f32 %v333, %v599
      %v607 = vmul.f32 %v334, %v602
      %v608 = vmul.f32 %v335, %v601
      %v609 = vmul.f32 %v336, %v599
      %v610 = vmul.f32 %v337, %v602
      %v611 = vmul.f32 %v338, %v601
      %v612 = vmul.f32 %v339, %v599
      %v613 = vmul.f32 %v340, %v602
      %v614 = vmul.f32 %v341, %v601
      %v624 = vrot.slane %v606, 1
      %v625 = vrot.slane %v609, 1
      %v626 = vsel %vm494, %v624, %v625
      %v627 = vrot.slane %v607, 1
      %v628 = vrot.slane %v610, 1
      %v629 = vsel %vm494, %v627, %v628
      %v630 = vrot.slane %v608, 1
      %v631 = vrot.slane %v611, 1
      %v632 = vsel %vm494, %v630, %v631
      %v633 = vrot.slane %v612, 1
      %v634 = vsel %vm494, %v625, %v633
      %v635 = vrot.slane %v613, 1
      %v636 = vsel %vm494, %v628, %v635
      %v637 = vrot.slane %v614, 1
      %v638 = vsel %vm494, %v631, %v637
      %639 = vrot.lane.b32.xlu0 %v626, 96
      %v640 = vpop.permute.xlu0 %639
      %641 = vrot.lane.b32.xlu0 %v629, 96
      %v642 = vpop.permute.xlu0 %641
      %643 = vrot.lane.b32.xlu0 %v632, 96
      %v644 = vpop.permute.xlu0 %643
      %645 = vrot.lane.b32.xlu0 %v634, 96
      %v646 = vpop.permute.xlu0 %645
      %647 = vrot.lane.b32.xlu0 %v636, 96
      %v648 = vpop.permute.xlu0 %647
      %649 = vrot.lane.b32.xlu0 %v638, 96
      %v650 = vpop.permute.xlu0 %649
      %v651 = vsel %vm461, %v640, %v642
      %v652 = vsel %vm461, %v642, %v644
      %v653 = vsel %vm461, %v646, %v648
      %v654 = vsel %vm461, %v648, %v650
      %v659 = vadd.f32 %v584, %v651
      %v660 = vadd.f32 %v585, %v652
      %v661 = vadd.f32 %v586, %v653
      %v662 = vadd.f32 %v587, %v654
      %v663 = vlaneseq
      %v664 = vshrl.u32 %v663, 7
      %v665 = vsub.s32 6, %v664
      %v666 = vrot.slane %v342, %v665
      %v667 = vlaneseq
      %v668 = vshrl.u32 %v667, 7
      %v669 = vsub.s32 6, %v668
      %v670 = vrot.slane %v343, %v669
      %v671 = vmul.f32 %v333, %v666
      %v672 = vmul.f32 %v334, %v670
      %v673 = vmul.f32 %v336, %v666
      %v674 = vmul.f32 %v337, %v670
      %v675 = vmul.f32 %v339, %v666
      %v676 = vmul.f32 %v340, %v670
      %vm683 = vcmask 1045504
      %v684 = vrot.slane %v671, 2
      %v685 = vrot.slane %v673, 2
      %v686 = vsel %vm683, %v684, %v685
      %v687 = vrot.slane %v672, 2
      %v688 = vrot.slane %v674, 2
      %v689 = vsel %vm683, %v687, %v688
      %v690 = vrot.slane %v675, 2
      %v691 = vsel %vm683, %v685, %v690
      %v692 = vrot.slane %v676, 2
      %v693 = vsel %vm683, %v688, %v692
      %v698 = vadd.f32 %v659, %v686
      %v699 = vadd.f32 %v660, %v689
      %v700 = vadd.f32 %v661, %v691
      %v701 = vadd.f32 %v662, %v693
      %v702 = vlaneseq
      %v703 = vshrl.u32 %v702, 7
      %v704 = vsub.s32 7, %v703
      %v705 = vrot.slane %v342, %v704
      %v706 = vlaneseq
      %v707 = vshrl.u32 %v706, 7
      %v708 = vsub.s32 7, %v707
      %v709 = vrot.slane %v343, %v708
      %712 = vrot.lane.b32.xlu0 %v705, 16
      %v713 = vpop.permute.xlu0 %712
      %714 = vrot.lane.b32.xlu0 %v709, 16
      %v715 = vpop.permute.xlu0 %714
      %v716 = vsel %vm376, %v713, %v715
      %v720 = vmul.f32 %v333, %v713
      %v721 = vmul.f32 %v334, %v716
      %v722 = vmul.f32 %v335, %v715
      %v723 = vmul.f32 %v336, %v713
      %v724 = vmul.f32 %v337, %v716
      %v725 = vmul.f32 %v338, %v715
      %v726 = vmul.f32 %v339, %v713
      %v727 = vmul.f32 %v340, %v716
      %v728 = vmul.f32 %v341, %v715
      %v738 = vrot.slane %v720, 2
      %v739 = vrot.slane %v723, 2
      %v740 = vsel %vm683, %v738, %v739
      %v741 = vrot.slane %v721, 2
      %v742 = vrot.slane %v724, 2
      %v743 = vsel %vm683, %v741, %v742
      %v744 = vrot.slane %v722, 2
      %v745 = vrot.slane %v725, 2
      %v746 = vsel %vm683, %v744, %v745
      %v747 = vrot.slane %v726, 2
      %v748 = vsel %vm683, %v739, %v747
      %v749 = vrot.slane %v727, 2
      %v750 = vsel %vm683, %v742, %v749
      %v751 = vrot.slane %v728, 2
      %v752 = vsel %vm683, %v745, %v751
      %753 = vrot.lane.b32.xlu0 %v740, 112
      %v754 = vpop.permute.xlu0 %753
      %755 = vrot.lane.b32.xlu0 %v743, 112
      %v756 = vpop.permute.xlu0 %755
      %757 = vrot.lane.b32.xlu0 %v746, 112
      %v758 = vpop.permute.xlu0 %757
      %759 = vrot.lane.b32.xlu0 %v748, 112
      %v760 = vpop.permute.xlu0 %759
      %761 = vrot.lane.b32.xlu0 %v750, 112
      %v762 = vpop.permute.xlu0 %761
      %763 = vrot.lane.b32.xlu0 %v752, 112
      %v764 = vpop.permute.xlu0 %763
      %v765 = vsel %vm405, %v754, %v756
      %v766 = vsel %vm405, %v756, %v758
      %v767 = vsel %vm405, %v760, %v762
      %v768 = vsel %vm405, %v762, %v764
      %v773 = vadd.f32 %v698, %v765
      %v774 = vadd.f32 %v699, %v766
      %v775 = vadd.f32 %v700, %v767
      %v776 = vadd.f32 %v701, %v768
      %v777 = vlaneseq
      %v778 = vshrl.u32 %v777, 7
      %v779 = vsub.s32 0, %v778
      %v780 = vrot.slane %v344, %v779
      %v781 = vlaneseq
      %v782 = vshrl.u32 %v781, 7
      %v783 = vsub.s32 0, %v782
      %v784 = vrot.slane %v345, %v783
      %787 = vrot.lane.b32.xlu0 %v780, 32
      %v788 = vpop.permute.xlu0 %787
      %789 = vrot.lane.b32.xlu0 %v784, 32
      %v790 = vpop.permute.xlu0 %789
      %v791 = vsel %vm432, %v788, %v790
      %v795 = vmul.f32 %v333, %v788
      %v796 = vmul.f32 %v334, %v791
      %v797 = vmul.f32 %v335, %v790
      %v798 = vmul.f32 %v336, %v788
      %v799 = vmul.f32 %v337, %v791
      %v800 = vmul.f32 %v338, %v790
      %v801 = vmul.f32 %v339, %v788
      %v802 = vmul.f32 %v340, %v791
      %v803 = vmul.f32 %v341, %v790
      %v813 = vrot.slane %v795, 2
      %v814 = vrot.slane %v798, 2
      %v815 = vsel %vm683, %v813, %v814
      %v816 = vrot.slane %v796, 2
      %v817 = vrot.slane %v799, 2
      %v818 = vsel %vm683, %v816, %v817
      %v819 = vrot.slane %v797, 2
      %v820 = vrot.slane %v800, 2
      %v821 = vsel %vm683, %v819, %v820
      %v822 = vrot.slane %v801, 2
      %v823 = vsel %vm683, %v814, %v822
      %v824 = vrot.slane %v802, 2
      %v825 = vsel %vm683, %v817, %v824
      %v826 = vrot.slane %v803, 2
      %v827 = vsel %vm683, %v820, %v826
      %828 = vrot.lane.b32.xlu0 %v815, 96
      %v829 = vpop.permute.xlu0 %828
      %830 = vrot.lane.b32.xlu0 %v818, 96
      %v831 = vpop.permute.xlu0 %830
      %832 = vrot.lane.b32.xlu0 %v821, 96
      %v833 = vpop.permute.xlu0 %832
      %834 = vrot.lane.b32.xlu0 %v823, 96
      %v835 = vpop.permute.xlu0 %834
      %836 = vrot.lane.b32.xlu0 %v825, 96
      %v837 = vpop.permute.xlu0 %836
      %838 = vrot.lane.b32.xlu0 %v827, 96
      %v839 = vpop.permute.xlu0 %838
      %v840 = vsel %vm461, %v829, %v831
      %v841 = vsel %vm461, %v831, %v833
      %v842 = vsel %vm461, %v835, %v837
      %v843 = vsel %vm461, %v837, %v839
      %v848 = vadd.f32 %v773, %v840
      %v849 = vadd.f32 %v774, %v841
      %v850 = vadd.f32 %v775, %v842
      %v851 = vadd.f32 %v776, %v843
      %v852 = vld [vmem:[%s2] sm:$0x3]
      %v854 = vlaneseq
      %v855 = vshrl.u32 %v854, 7
      %v856 = vsub.s32 0, %v855
      %v857 = vrot.slane %v852, %v856
      %v858 = vlaneseq
      %v859 = vshrl.u32 %v858, 7
      %v860 = vsub.s32 1, %v859
      %v861 = vrot.slane %v852, %v860
      %v864 = vadd.f32 %v848, %v857
      %v865 = vadd.f32 %v849, %v861
      %v866 = vadd.f32 %v850, %v857
      %v867 = vadd.f32 %v851, %v861
      %v868 = vadd.f32 %v864, 3.0
      %v869 = vadd.f32 %v865, 3.0
      %v870 = vadd.f32 %v866, 3.0
      %v871 = vadd.f32 %v867, 3.0
      %v872 = vmax.f32 %v868, 0.0
      %v873 = vmax.f32 %v869, 0.0
      %v874 = vmax.f32 %v870, 0.0
      %v875 = vmax.f32 %v871, 0.0
      %v876 = vmin.f32 %v872, 6.0
      %v877 = vmin.f32 %v873, 6.0
      %v878 = vmin.f32 %v874, 6.0
      %v879 = vmin.f32 %v875, 6.0
      %v880 = vmul.f32 %v864, %v876
      %v881 = vmul.f32 %v865, %v877
      %v882 = vmul.f32 %v866, %v878
      %v883 = vmul.f32 %v867, %v879
      %v884 = vmul.f32 %v880, 0.16666667
      %v885 = vmul.f32 %v881, 0.16666667
      %v886 = vmul.f32 %v882, 0.16666667
      %v887 = vmul.f32 %v883, 0.16666667
      %v888 = vadd.f32 %v884, %v886
      %v889 = vrot.slane %v888, 4
      %v890 = vadd.f32 %v888, %v889
      %v891 = vrot.slane %v890, 2
      %v892 = vadd.f32 %v890, %v891
      %v893 = vrot.slane %v892, 1
      %v894 = vadd.f32 %v892, %v893
      %v895 = vadd.f32 %v885, %v887
      %v896 = vrot.slane %v895, 4
      %v897 = vadd.f32 %v895, %v896
      %v898 = vrot.slane %v897, 2
      %v899 = vadd.f32 %v897, %v898
      %v900 = vrot.slane %v899, 1
      %v901 = vadd.f32 %v899, %v900
      %v902 = vld [vmem:[%s3] sm:$0xff]
      %v904 = vcombine.high %v902, %v902
      %v906 = vmul.f32 %v894, %v902
      %v907 = vmul.f32 %v901, %v904
      %vm908 = vcmask 1043456
      %v909 = vsel %vm908, %v906, 0.0
      %v910 = vsel %vm908, %v907, 0.0
      %v911 = vadd.f32 %v909, %v910
      %912 = vadd.xlane.f32.xlu0 %v911
      %v913 = vpop.xlane.xlu0 %912
      %v914 = vld [vmem:[%s4] sm:$0xf]
      %v915 = vadd.f32 %v913, %v914
      %v916 = vmax.f32 %v915, 0.0
      %v917 = vld [vmem:[%s5] sm:$0xff]
      %919 = vset.pattern.permute.xlu0 0
      %920 = vperm.xlu0 %919, %v916
      %v921 = vpop.permute.xlu0 %920
      %v924 = vcombine.high %v917, %v917
      %v926 = vmul.f32 %v921, %v917
      %v927 = vmul.f32 %v921, %v924
      %v928 = vsel %vm908, %v926, 0.0
      %v929 = vrot.slane %v928, 4
      %v930 = vadd.f32 %v928, %v929
      %v931 = vrot.slane %v930, 2
      %v932 = vadd.f32 %v930, %v931
      %v933 = vrot.slane %v932, 1
      %v934 = vadd.f32 %v932, %v933
      %v935 = vsel %vm908, %v927, 0.0
      %v936 = vrot.slane %v935, 4
      %v937 = vadd.f32 %v935, %v936
      %v938 = vrot.slane %v937, 2
      %v939 = vadd.f32 %v937, %v938
      %v940 = vrot.slane %v939, 1
      %v941 = vadd.f32 %v939, %v940
      %v942 = vld [vmem:[%s6] sm:$0x3]
      %v944 = vlaneseq
      %v945 = vshrl.u32 %v944, 7
      %v946 = vsub.s32 0, %v945
      %v947 = vrot.slane %v942, %v946
      %v948 = vlaneseq
      %v949 = vshrl.u32 %v948, 7
      %v950 = vsub.s32 1, %v949
      %v951 = vrot.slane %v942, %v950
      %v954 = vadd.f32 %v934, %v947
      %v955 = vadd.f32 %v941, %v951
      %v956 = vadd.f32 %v954, 3.0
      %v957 = vadd.f32 %v955, 3.0
      %v958 = vmax.f32 %v956, 0.0
      %v959 = vmax.f32 %v957, 0.0
      %v960 = vmin.f32 %v958, 6.0
      %v961 = vmin.f32 %v959, 6.0
      %v962 = vmul.f32 %v960, 0.16666667
      %v963 = vmul.f32 %v961, 0.16666667
      %v964 = vlaneseq
      %v965 = vshrl.u32 %v964, 7
      %v966 = vsub.s32 0, %v965
      %v967 = vrot.slane %v962, %v966
      %v968 = vlaneseq
      %v969 = vshrl.u32 %v968, 7
      %v970 = vsub.s32 0, %v969
      %v971 = vrot.slane %v963, %v970
      %v972 = vmul.f32 %v884, %v967
      %v973 = vmul.f32 %v885, %v971
      %v974 = vmul.f32 %v886, %v967
      %v975 = vmul.f32 %v887, %v971
      %v976 = vpack.c.bf16 %v974, %v972
      %v977 = vpack.c.bf16 %v975, %v973
      %v978 = vld [vmem:[%s7] sm:$0xff]
      %v979 = vld [vmem:[%s7 + $0x8] sm:$0xff]
      %v980 = vld [vmem:[%s7 + $0x10] sm:$0xff]
      %v981 = vld [vmem:[%s7 + $0x18] sm:$0xff]
      %v982 = vld [vmem:[%s7 + $0x20] sm:$0xff]
      %v983 = vld [vmem:[%s7 + $0x28] sm:$0xff]
      %v984 = vld [vmem:[%s7 + $0x30] sm:$0xff]
      %v985 = vld [vmem:[%s7 + $0x38] sm:$0xff]
      %v986 = vld [vmem:[%s7 + $0x40] sm:$0xff]
      %v987 = vld [vmem:[%s7 + $0x48] sm:$0xff]
      %v988 = vld [vmem:[%s7 + $0x50] sm:$0xff]
      %v989 = vld [vmem:[%s7 + $0x58] sm:$0xff]
      %v990 = vld [vmem:[%s7 + $0x60] sm:$0xff]
      %v991 = vld [vmem:[%s7 + $0x68] sm:$0xff]
      %v992 = vld [vmem:[%s7 + $0x70] sm:$0xff]
      %v993 = vld [vmem:[%s7 + $0x78] sm:$0xff]
      %v994 = vld [vmem:[%s7 + $0x80] sm:$0xff]
      %v995 = vld [vmem:[%s7 + $0x88] sm:$0xff]
      %v996 = vld [vmem:[%s7 + $0x90] sm:$0xff]
      %v997 = vld [vmem:[%s7 + $0x98] sm:$0xff]
      %v998 = vld [vmem:[%s7 + $0xa0] sm:$0xff]
      %v999 = vld [vmem:[%s7 + $0xa8] sm:$0xff]
      %v1000 = vld [vmem:[%s7 + $0xb0] sm:$0xff]
      %v1001 = vld [vmem:[%s7 + $0xb8] sm:$0xff]
      %v1002 = vld [vmem:[%s7 + $0xc0] sm:$0xff]
      %v1003 = vld [vmem:[%s7 + $0xc8] sm:$0xff]
      %v1004 = vld [vmem:[%s7 + $0xd0] sm:$0xff]
      %v1005 = vld [vmem:[%s7 + $0xd8] sm:$0xff]
      %v1006 = vld [vmem:[%s7 + $0xe0] sm:$0xff]
      %v1007 = vld [vmem:[%s7 + $0xe8] sm:$0xff]
      %v1008 = vld [vmem:[%s7 + $0xf0] sm:$0xff]
      %v1009 = vld [vmem:[%s7 + $0xf8] sm:$0xff]
      %v1010 = vld [vmem:[%s7 + $0x100] sm:$0xff]
      %v1011 = vld [vmem:[%s7 + $0x108] sm:$0xff]
      %v1012 = vld [vmem:[%s7 + $0x110] sm:$0xff]
      %v1013 = vld [vmem:[%s7 + $0x118] sm:$0xff]
      %v1014 = vld [vmem:[%s7 + $0x120] sm:$0xff]
      %v1015 = vld [vmem:[%s7 + $0x128] sm:$0xff]
      %v1016 = vld [vmem:[%s7 + $0x130] sm:$0xff]
      %v1017 = vld [vmem:[%s7 + $0x138] sm:$0xff]
      %v1018 = vld [vmem:[%s7 + $0x140] sm:$0xff]
      %v1019 = vld [vmem:[%s7 + $0x148] sm:$0xff]
      %v1020 = vld [vmem:[%s7 + $0x150] sm:$0xff]
      %v1021 = vld [vmem:[%s7 + $0x158] sm:$0xff]
      %v1022 = vld [vmem:[%s7 + $0x160] sm:$0xff]
      %v1023 = vld [vmem:[%s7 + $0x168] sm:$0xff]
      %v1024 = vld [vmem:[%s7 + $0x170] sm:$0xff]
      %v1025 = vld [vmem:[%s7 + $0x178] sm:$0xff]
      %v1026 = vld [vmem:[%s7 + $0x180] sm:$0xff]
      %v1027 = vld [vmem:[%s7 + $0x188] sm:$0xff]
      %v1028 = vld [vmem:[%s7 + $0x190] sm:$0xff]
      %v1029 = vld [vmem:[%s7 + $0x198] sm:$0xff]
      %v1030 = vld [vmem:[%s7 + $0x1a0] sm:$0xff]
      %v1031 = vld [vmem:[%s7 + $0x1a8] sm:$0xff]
      %v1032 = vld [vmem:[%s7 + $0x1b0] sm:$0xff]
      %v1033 = vld [vmem:[%s7 + $0x1b8] sm:$0xff]
      %v1034 = vld [vmem:[%s7 + $0x1c0] sm:$0xff]
      %v1035 = vld [vmem:[%s7 + $0x1c8] sm:$0xff]
      %v1036 = vld [vmem:[%s7 + $0x1d0] sm:$0xff]
      %v1037 = vld [vmem:[%s7 + $0x1d8] sm:$0xff]
      %v1038 = vld [vmem:[%s7 + $0x1e0] sm:$0xff]
      %v1039 = vld [vmem:[%s7 + $0x1e8] sm:$0xff]
      %v1040 = vld [vmem:[%s7 + $0x1f0] sm:$0xff]
      %v1041 = vld [vmem:[%s7 + $0x1f8] sm:$0xff]
      %v1042 = vld [vmem:[%s8] sm:$0xf]
      %v1044 = vlaneseq
      %v1045 = vshrl.u32 %v1044, 7
      %v1046 = vsub.s32 0, %v1045
      %v1047 = vrot.slane %v1042, %v1046
      %v1048 = vlaneseq
      %v1049 = vshrl.u32 %v1048, 7
      %v1050 = vsub.s32 1, %v1049
      %v1051 = vrot.slane %v1042, %v1050
      %v1052 = vlaneseq
      %v1053 = vshrl.u32 %v1052, 7
      %v1054 = vsub.s32 2, %v1053
      %v1055 = vrot.slane %v1042, %v1054
      %v1056 = vlaneseq
      %v1057 = vshrl.u32 %v1056, 7
      %v1058 = vsub.s32 3, %v1057
      %v1059 = vrot.slane %v1042, %v1058
      %v1128 = vunpack.c.l.b16 %v978
      %v1129 = vunpack.c.h.b16 %v978
      %v1130 = vunpack.c.l.b16 %v979
      %v1131 = vunpack.c.h.b16 %v979
      %v1132 = vunpack.c.l.b16 %v980
      %v1133 = vunpack.c.h.b16 %v980
      %v1134 = vunpack.c.l.b16 %v981
      %v1135 = vunpack.c.h.b16 %v981
      %v1136 = vunpack.c.l.b16 %v982
      %v1137 = vunpack.c.h.b16 %v982
      %v1138 = vunpack.c.l.b16 %v983
      %v1139 = vunpack.c.h.b16 %v983
      %v1140 = vunpack.c.l.b16 %v984
      %v1141 = vunpack.c.h.b16 %v984
      %v1142 = vunpack.c.l.b16 %v985
      %v1143 = vunpack.c.h.b16 %v985
      %v1144 = vunpack.c.l.b16 %v986
      %v1145 = vunpack.c.h.b16 %v986
      %v1146 = vunpack.c.l.b16 %v987
      %v1147 = vunpack.c.h.b16 %v987
      %v1148 = vunpack.c.l.b16 %v988
      %v1149 = vunpack.c.h.b16 %v988
      %v1150 = vunpack.c.l.b16 %v989
      %v1151 = vunpack.c.h.b16 %v989
      %v1152 = vunpack.c.l.b16 %v990
      %v1153 = vunpack.c.h.b16 %v990
      %v1154 = vunpack.c.l.b16 %v991
      %v1155 = vunpack.c.h.b16 %v991
      %v1156 = vunpack.c.l.b16 %v992
      %v1157 = vunpack.c.h.b16 %v992
      %v1158 = vunpack.c.l.b16 %v993
      %v1159 = vunpack.c.h.b16 %v993
      %v1160 = vunpack.c.l.b16 %v994
      %v1161 = vunpack.c.h.b16 %v994
      %v1162 = vunpack.c.l.b16 %v995
      %v1163 = vunpack.c.h.b16 %v995
      %v1164 = vunpack.c.l.b16 %v996
      %v1165 = vunpack.c.h.b16 %v996
      %v1166 = vunpack.c.l.b16 %v997
      %v1167 = vunpack.c.h.b16 %v997
      %v1168 = vunpack.c.l.b16 %v998
      %v1169 = vunpack.c.h.b16 %v998
      %v1170 = vunpack.c.l.b16 %v999
      %v1171 = vunpack.c.h.b16 %v999
      %v1172 = vunpack.c.l.b16 %v1000
      %v1173 = vunpack.c.h.b16 %v1000
      %v1174 = vunpack.c.l.b16 %v1001
      %v1175 = vunpack.c.h.b16 %v1001
      %v1176 = vunpack.c.l.b16 %v1002
      %v1177 = vunpack.c.h.b16 %v1002
      %v1178 = vunpack.c.l.b16 %v1003
      %v1179 = vunpack.c.h.b16 %v1003
      %v1180 = vunpack.c.l.b16 %v1004
      %v1181 = vunpack.c.h.b16 %v1004
      %v1182 = vunpack.c.l.b16 %v1005
      %v1183 = vunpack.c.h.b16 %v1005
      %v1184 = vunpack.c.l.b16 %v1006
      %v1185 = vunpack.c.h.b16 %v1006
      %v1186 = vunpack.c.l.b16 %v1007
      %v1187 = vunpack.c.h.b16 %v1007
      %v1188 = vunpack.c.l.b16 %v1008
      %v1189 = vunpack.c.h.b16 %v1008
      %v1190 = vunpack.c.l.b16 %v1009
      %v1191 = vunpack.c.h.b16 %v1009
      %v1192 = vunpack.c.l.b16 %v1010
      %v1193 = vunpack.c.h.b16 %v1010
      %v1194 = vunpack.c.l.b16 %v1011
      %v1195 = vunpack.c.h.b16 %v1011
      %v1196 = vunpack.c.l.b16 %v1012
      %v1197 = vunpack.c.h.b16 %v1012
      %v1198 = vunpack.c.l.b16 %v1013
      %v1199 = vunpack.c.h.b16 %v1013
      %v1200 = vunpack.c.l.b16 %v1014
      %v1201 = vunpack.c.h.b16 %v1014
      %v1202 = vunpack.c.l.b16 %v1015
      %v1203 = vunpack.c.h.b16 %v1015
      %v1204 = vunpack.c.l.b16 %v1016
      %v1205 = vunpack.c.h.b16 %v1016
      %v1206 = vunpack.c.l.b16 %v1017
      %v1207 = vunpack.c.h.b16 %v1017
      %v1208 = vunpack.c.l.b16 %v1018
      %v1209 = vunpack.c.h.b16 %v1018
      %v1210 = vunpack.c.l.b16 %v1019
      %v1211 = vunpack.c.h.b16 %v1019
      %v1212 = vunpack.c.l.b16 %v1020
      %v1213 = vunpack.c.h.b16 %v1020
      %v1214 = vunpack.c.l.b16 %v1021
      %v1215 = vunpack.c.h.b16 %v1021
      %v1216 = vunpack.c.l.b16 %v1022
      %v1217 = vunpack.c.h.b16 %v1022
      %v1218 = vunpack.c.l.b16 %v1023
      %v1219 = vunpack.c.h.b16 %v1023
      %v1220 = vunpack.c.l.b16 %v1024
      %v1221 = vunpack.c.h.b16 %v1024
      %v1222 = vunpack.c.l.b16 %v1025
      %v1223 = vunpack.c.h.b16 %v1025
      %v1224 = vunpack.c.l.b16 %v1026
      %v1225 = vunpack.c.h.b16 %v1026
      %v1226 = vunpack.c.l.b16 %v1027
      %v1227 = vunpack.c.h.b16 %v1027
      %v1228 = vunpack.c.l.b16 %v1028
      %v1229 = vunpack.c.h.b16 %v1028
      %v1230 = vunpack.c.l.b16 %v1029
      %v1231 = vunpack.c.h.b16 %v1029
      %v1232 = vunpack.c.l.b16 %v1030
      %v1233 = vunpack.c.h.b16 %v1030
      %v1234 = vunpack.c.l.b16 %v1031
      %v1235 = vunpack.c.h.b16 %v1031
      %v1236 = vunpack.c.l.b16 %v1032
      %v1237 = vunpack.c.h.b16 %v1032
      %v1238 = vunpack.c.l.b16 %v1033
      %v1239 = vunpack.c.h.b16 %v1033
      %v1240 = vunpack.c.l.b16 %v1034
      %v1241 = vunpack.c.h.b16 %v1034
      %v1242 = vunpack.c.l.b16 %v1035
      %v1243 = vunpack.c.h.b16 %v1035
      %v1244 = vunpack.c.l.b16 %v1036
      %v1245 = vunpack.c.h.b16 %v1036
      %v1246 = vunpack.c.l.b16 %v1037
      %v1247 = vunpack.c.h.b16 %v1037
      %v1248 = vunpack.c.l.b16 %v1038
      %v1249 = vunpack.c.h.b16 %v1038
      %v1250 = vunpack.c.l.b16 %v1039
      %v1251 = vunpack.c.h.b16 %v1039
      %v1252 = vunpack.c.l.b16 %v1040
      %v1253 = vunpack.c.h.b16 %v1040
      %v1254 = vunpack.c.l.b16 %v1041
      %v1255 = vunpack.c.h.b16 %v1041
      %v1256 = vpack.c.b16 %v1132, %v1128
      %v1257 = vpack.c.b16 %v1133, %v1129
      %v1258 = vpack.c.b16 %v1134, %v1130
      %v1259 = vpack.c.b16 %v1135, %v1131
      %v1260 = vpack.c.b16 %v1140, %v1136
      %v1261 = vpack.c.b16 %v1141, %v1137
      %v1262 = vpack.c.b16 %v1142, %v1138
      %v1263 = vpack.c.b16 %v1143, %v1139
      %v1264 = vpack.c.b16 %v1148, %v1144
      %v1265 = vpack.c.b16 %v1149, %v1145
      %v1266 = vpack.c.b16 %v1150, %v1146
      %v1267 = vpack.c.b16 %v1151, %v1147
      %v1268 = vpack.c.b16 %v1156, %v1152
      %v1269 = vpack.c.b16 %v1157, %v1153
      %v1270 = vpack.c.b16 %v1158, %v1154
      %v1271 = vpack.c.b16 %v1159, %v1155
      %v1272 = vpack.c.b16 %v1164, %v1160
      %v1273 = vpack.c.b16 %v1165, %v1161
      %v1274 = vpack.c.b16 %v1166, %v1162
      %v1275 = vpack.c.b16 %v1167, %v1163
      %v1276 = vpack.c.b16 %v1172, %v1168
      %v1277 = vpack.c.b16 %v1173, %v1169
      %v1278 = vpack.c.b16 %v1174, %v1170
      %v1279 = vpack.c.b16 %v1175, %v1171
      %v1280 = vpack.c.b16 %v1180, %v1176
      %v1281 = vpack.c.b16 %v1181, %v1177
      %v1282 = vpack.c.b16 %v1182, %v1178
      %v1283 = vpack.c.b16 %v1183, %v1179
      %v1284 = vpack.c.b16 %v1188, %v1184
      %v1285 = vpack.c.b16 %v1189, %v1185
      %v1286 = vpack.c.b16 %v1190, %v1186
      %v1287 = vpack.c.b16 %v1191, %v1187
      %v1288 = vpack.c.b16 %v1196, %v1192
      %v1289 = vpack.c.b16 %v1197, %v1193
      %v1290 = vpack.c.b16 %v1198, %v1194
      %v1291 = vpack.c.b16 %v1199, %v1195
      %v1292 = vpack.c.b16 %v1204, %v1200
      %v1293 = vpack.c.b16 %v1205, %v1201
      %v1294 = vpack.c.b16 %v1206, %v1202
      %v1295 = vpack.c.b16 %v1207, %v1203
      %v1296 = vpack.c.b16 %v1212, %v1208
      %v1297 = vpack.c.b16 %v1213, %v1209
      %v1298 = vpack.c.b16 %v1214, %v1210
      %v1299 = vpack.c.b16 %v1215, %v1211
      %v1300 = vpack.c.b16 %v1220, %v1216
      %v1301 = vpack.c.b16 %v1221, %v1217
      %v1302 = vpack.c.b16 %v1222, %v1218
      %v1303 = vpack.c.b16 %v1223, %v1219
      %v1304 = vpack.c.b16 %v1228, %v1224
      %v1305 = vpack.c.b16 %v1229, %v1225
      %v1306 = vpack.c.b16 %v1230, %v1226
      %v1307 = vpack.c.b16 %v1231, %v1227
      %v1308 = vpack.c.b16 %v1236, %v1232
      %v1309 = vpack.c.b16 %v1237, %v1233
      %v1310 = vpack.c.b16 %v1238, %v1234
      %v1311 = vpack.c.b16 %v1239, %v1235
      %v1312 = vpack.c.b16 %v1244, %v1240
      %v1313 = vpack.c.b16 %v1245, %v1241
      %v1314 = vpack.c.b16 %v1246, %v1242
      %v1315 = vpack.c.b16 %v1247, %v1243
      %v1316 = vpack.c.b16 %v1252, %v1248
      %v1317 = vpack.c.b16 %v1253, %v1249
      %v1318 = vpack.c.b16 %v1254, %v1250
      %v1319 = vpack.c.b16 %v1255, %v1251
      %1384 = vmatprep.subr.bf16.mxu0 %v1285
      %1385 = vmatpush1.bf16.msra.mxu0 %v1284
      %1386 = vmatprep.subr.bf16.mxu0 %v1281
      %1387 = vmatpush1.bf16.msra.mxu0 %v1280
      %1388 = vmatprep.subr.bf16.mxu0 %v1277
      %1389 = vmatpush1.bf16.msra.mxu0 %v1276
      %1390 = vmatprep.subr.bf16.mxu0 %v1273
      %1391 = vmatpush1.bf16.msra.mxu0 %v1272
      %1392 = vmatprep.subr.bf16.mxu0 %v1269
      %1393 = vmatpush1.bf16.msra.mxu0 %v1268
      %1394 = vmatprep.subr.bf16.mxu0 %v1265
      %1395 = vmatpush1.bf16.msra.mxu0 %v1264
      %1396 = vmatprep.subr.bf16.mxu0 %v1261
      %1397 = vmatpush1.bf16.msra.mxu0 %v1260
      %1398 = vmatprep.subr.bf16.mxu0 %v1257
      %1399 = vmatpush1.bf16.msra.mxu0 %v1256
      %1400 = vmatprep.subr.bf16.mxu0 %v1317
      %1401 = vmatpush2.bf16.msra.mxu0 %v1316
      %1402 = vmatprep.subr.bf16.mxu0 %v1313
      %1403 = vmatpush2.bf16.msra.mxu0 %v1312
      %1404 = vmatprep.subr.bf16.mxu0 %v1309
      %1405 = vmatpush2.bf16.msra.mxu0 %v1308
      %1406 = vmatprep.subr.bf16.mxu0 %v1305
      %1407 = vmatpush2.bf16.msra.mxu0 %v1304
      %1408 = vmatprep.subr.bf16.mxu0 %v1301
      %1409 = vmatpush2.bf16.msra.mxu0 %v1300
      %1410 = vmatprep.subr.bf16.mxu0 %v1297
      %1411 = vmatpush2.bf16.msra.mxu0 %v1296
      %1412 = vmatprep.subr.bf16.mxu0 %v1293
      %1413 = vmatpush2.bf16.msra.mxu0 %v1292
      %1414 = vmatprep.subr.bf16.mxu0 %v1289
      %1415 = vmatpush2.bf16.msra.mxu0 %v1288
      %1416 = vmatprep.mubr.bf16.mxu0 %v977
      %1417 = vmatmul.mubr.bf16.gmra.mxu0 %v976
      %v1418 = vpop.f32.mrf.mxu0
      %v1419 = vadd.f32 %v1047, %v1418
      %v1420 = vpop.f32.mrf.mxu0
      %v1421 = vadd.f32 %v1051, %v1420
      %v1422 = vpop.f32.mrf.mxu0
      %v1423 = vadd.f32 %v1047, %v1422
      %v1424 = vpop.f32.mrf.mxu0
      %v1425 = vadd.f32 %v1051, %v1424
      %1426 = vdwg.mxu0
      %1427 = vmatprep.subr.bf16.mxu0 %v1287
      %1428 = vmatpush1.bf16.msra.mxu0 %v1286
      %1429 = vmatprep.subr.bf16.mxu0 %v1283
      %1430 = vmatpush1.bf16.msra.mxu0 %v1282
      %1431 = vmatprep.subr.bf16.mxu0 %v1279
      %1432 = vmatpush1.bf16.msra.mxu0 %v1278
      %1433 = vmatprep.subr.bf16.mxu0 %v1275
      %1434 = vmatpush1.bf16.msra.mxu0 %v1274
      %1435 = vmatprep.subr.bf16.mxu0 %v1271
      %1436 = vmatpush1.bf16.msra.mxu0 %v1270
      %1437 = vmatprep.subr.bf16.mxu0 %v1267
      %1438 = vmatpush1.bf16.msra.mxu0 %v1266
      %1439 = vmatprep.subr.bf16.mxu0 %v1263
      %1440 = vmatpush1.bf16.msra.mxu0 %v1262
      %1441 = vmatprep.subr.bf16.mxu0 %v1259
      %1442 = vmatpush1.bf16.msra.mxu0 %v1258
      %1443 = vmatprep.subr.bf16.mxu0 %v1319
      %1444 = vmatpush2.bf16.msra.mxu0 %v1318
      %1445 = vmatprep.subr.bf16.mxu0 %v1315
      %1446 = vmatpush2.bf16.msra.mxu0 %v1314
      %1447 = vmatprep.subr.bf16.mxu0 %v1311
      %1448 = vmatpush2.bf16.msra.mxu0 %v1310
      %1449 = vmatprep.subr.bf16.mxu0 %v1307
      %1450 = vmatpush2.bf16.msra.mxu0 %v1306
      %1451 = vmatprep.subr.bf16.mxu0 %v1303
      %1452 = vmatpush2.bf16.msra.mxu0 %v1302
      %1453 = vmatprep.subr.bf16.mxu0 %v1299
      %1454 = vmatpush2.bf16.msra.mxu0 %v1298
      %1455 = vmatprep.subr.bf16.mxu0 %v1295
      %1456 = vmatpush2.bf16.msra.mxu0 %v1294
      %1457 = vmatprep.subr.bf16.mxu0 %v1291
      %1458 = vmatpush2.bf16.msra.mxu0 %v1290
      %1459 = vmatprep.mubr.bf16.mxu0 %v977
      %1460 = vmatmul.mubr.bf16.gmra.mxu0 %v976
      %v1461 = vpop.f32.mrf.mxu0
      %v1462 = vadd.f32 %v1055, %v1461
      %v1463 = vpop.f32.mrf.mxu0
      %v1464 = vadd.f32 %v1059, %v1463
      %v1465 = vpop.f32.mrf.mxu0
      %v1466 = vadd.f32 %v1055, %v1465
      %v1467 = vpop.f32.mrf.mxu0
      %v1468 = vadd.f32 %v1059, %v1467
      %1469 = vdwg.mxu0
      %v1470 = vadd.f32 %v1419, 3.0
      %v1471 = vadd.f32 %v1421, 3.0
      %v1472 = vadd.f32 %v1462, 3.0
      %v1473 = vadd.f32 %v1464, 3.0
      %v1474 = vadd.f32 %v1423, 3.0
      %v1475 = vadd.f32 %v1425, 3.0
      %v1476 = vadd.f32 %v1466, 3.0
      %v1477 = vadd.f32 %v1468, 3.0
      %v1478 = vmax.f32 %v1470, 0.0
      %v1479 = vmax.f32 %v1471, 0.0
      %v1480 = vmax.f32 %v1472, 0.0
      %v1481 = vmax.f32 %v1473, 0.0
      %v1482 = vmax.f32 %v1474, 0.0
      %v1483 = vmax.f32 %v1475, 0.0
      %v1484 = vmax.f32 %v1476, 0.0
      %v1485 = vmax.f32 %v1477, 0.0
      %v1486 = vmin.f32 %v1478, 6.0
      %v1487 = vmin.f32 %v1479, 6.0
      %v1488 = vmin.f32 %v1480, 6.0
      %v1489 = vmin.f32 %v1481, 6.0
      %v1490 = vmin.f32 %v1482, 6.0
      %v1491 = vmin.f32 %v1483, 6.0
      %v1492 = vmin.f32 %v1484, 6.0
      %v1493 = vmin.f32 %v1485, 6.0
      %v1494 = vmul.f32 %v1419, %v1486
      %v1495 = vmul.f32 %v1421, %v1487
      %v1496 = vmul.f32 %v1462, %v1488
      %v1497 = vmul.f32 %v1464, %v1489
      %v1498 = vmul.f32 %v1423, %v1490
      %v1499 = vmul.f32 %v1425, %v1491
      %v1500 = vmul.f32 %v1466, %v1492
      %v1501 = vmul.f32 %v1468, %v1493
      %v1502 = vmul.f32 %v1494, 0.16666667
      %v1503 = vmul.f32 %v1495, 0.16666667
      %v1504 = vmul.f32 %v1496, 0.16666667
      %v1505 = vmul.f32 %v1497, 0.16666667
      %v1506 = vmul.f32 %v1498, 0.16666667
      %v1507 = vmul.f32 %v1499, 0.16666667
      %v1508 = vmul.f32 %v1500, 0.16666667
      %v1509 = vmul.f32 %v1501, 0.16666667
      %1510 = vst [vmem:[%s332] sm:$0xff] %v1502
      %1511 = vst [vmem:[%s332 + $0x8] sm:$0xff] %v1503
      %1512 = vst [vmem:[%s332 + $0x10] sm:$0xff] %v1504
      %1513 = vst [vmem:[%s332 + $0x18] sm:$0xff] %v1505
      %1514 = vst [vmem:[%s332 + $0x20] sm:$0xff] %v1506
      %1515 = vst [vmem:[%s332 + $0x28] sm:$0xff] %v1507
      %1516 = vst [vmem:[%s332 + $0x30] sm:$0xff] %v1508
      %1517 = vst [vmem:[%s332 + $0x38] sm:$0xff] %v1509
      %p1518 = scmp.lt.s32.totalorder %s20, 1
      %s1519 = scalar_select %p1518, %s20, 1
      %s1520 = smul.addr %s1519, 8
      %s1521 = smul.addr %s1520, 8
      %s1522 = scalar_lea.vmem %s9, %s1521
      // Predicated region
      $region57: #{depthwise_separable.1} parent=55 // pred_check
        %p1523 = pneg %p232
      $region58: #{depthwise_separable.1} parent=55 // pred_check_branch
        %1525 = sbr.rel (%p1523) target = $region60
      $region59: #{depthwise_separable.1} parent=55 // pred_region
        _
      $region60: #{depthwise_separable.1} parent=55 // pred_fallthru
        _
    $region56: #{depthwise_separable.1} parent=5 // pred_fallthru
      _
    %p1526 = scmp.le.s32.totalorder 2, %s15
    // Predicated region
    $region61: #{depthwise_separable.1} parent=5 // pred_check
      %p1527 = pneg %p1526
    $region62: #{depthwise_separable.1} parent=5 // pred_check_branch
      %1529 = sbr.rel (%p1527) target = $region64
    $region63: #{depthwise_separable.1} parent=5 // pred_region
      %s1530 = ssub.s32 %s15, 2
      // Predicated region
      $region65: #{depthwise_separable.1} parent=63 // pred_check
        %p1531 = pneg %p238
      $region66: #{depthwise_separable.1} parent=63 // pred_check_branch
        %1533 = sbr.rel (%p1531) target = $region68
      $region67: #{depthwise_separable.1} parent=63 // pred_region
        %p1534 = scmp.lt.s32.totalorder %s21, 1
        %s1535 = scalar_select %p1534, %s21, 1
        %s1536 = smul.addr %s1535, 8
        %s1537 = smul.addr %s1536, 8
        %s1538 = scalar_lea.vmem %s9, %s1537
      $region68: #{depthwise_separable.1} parent=63 // pred_fallthru
        _
    $region64: #{depthwise_separable.1} parent=5 // pred_fallthru
      _
  $region6: #{depthwise_separable.1} parent=0 // loop_footer
    %s19 = sadd.s32 1, %s15
  $region7: #{depthwise_separable.1} parent=0 // loop_footer_branch
    %14 = sbr.rel target = $region3
  $region8: #{depthwise_separable.1} parent=0 // loop_exit
    _

</llo_original>
